<compile_context>
chip_gen: v7x
topology: tpu7x:2x2x1
jax: 0.10.0
libtpu: 0.0.40
codegen_flags: <defaults>
</compile_context>

<pallas_src>
import functools
from math import floor

import numpy as np

import jax
import jax.numpy as jnp
from jax.experimental import pallas as pl
from jax.experimental.pallas import tpu as pltpu


def convShape(in_size, kernel_size, stride, padding):
    return int(floor((in_size + 2 * padding - kernel_size) / stride + 1))


# ----------------------------------------------------------------------------
# Fused encoder kernel
# ----------------------------------------------------------------------------
def _encoder_kernel(col_ref, wc_ref, bc_ref, w2t_ref, b2_ref, w3_ref, b3_ref,
                    wf_ref, bsel_ref, heads_ref, idx_ref, *, c_out, n_win, ns):
    # col_ref  : [n_win, T, N*S]      im2col'd input, lanes ordered (n, s)
    # wc_ref   : [Cout, T]            conv weight
    # bc_ref   : [Cout, 1]            conv bias
    # w2t_ref  : [Cout, hidden, N*S]  Linear weight, per-channel, batch-tiled
    # b2_ref   : [1, hidden]
    # w3_ref   : [hidden, 2*latent]   concatenated means|log_var weights
    # b3_ref   : [1, 2*latent]
    # wf_ref   : [n_win, 1, N*S]      flat conv-spatial index of each window elem
    # bsel_ref : [N, N*S]             0/1 batch-selection matrix (kron(I_N, 1_S))
    # heads_ref: [N, 2*latent]        output (means | log_var)
    # idx_ref  : [Cout, N*S]          MaxPool3d return_indices (flat conv D*H*W)
    wc = wc_ref[...]                                            # [Cout, T]
    bc = jnp.broadcast_to(bc_ref[...], (c_out, ns))             # hoisted bias bcast

    def conv_slab(dw):
        # Conv3d (+bias) + ReLU for one pool-window offset, whole batch at once.
        a = jnp.dot(wc, col_ref[dw], preferred_element_type=jnp.float32)
        return jnp.maximum(a + bc, 0.0)                         # [Cout, N*S]

    # ---- MaxPool3d + argmax (first occurrence wins on ties), batched VPU chain
    m = conv_slab(0)
    idx = jnp.broadcast_to(wf_ref[0], (c_out, ns))
    for dw in range(1, n_win):
        s = conv_slab(dw)
        cand = jnp.broadcast_to(wf_ref[dw], (c_out, ns))
        gt = s > m
        m = jnp.where(gt, s, m)
        idx = jnp.where(gt, cand, idx)
    idx_ref[...] = idx                                          # one wide store

    # ---- Flatten + Linear without relayout of m:
    #   y[n,j] = sum_{c,s} m[c, n*S+s] * W2[c*S+s, j]
    #          = sum_l Bsel[n,l] * ( sum_c m[c,l] * W2t[c,j,l] ),   l = n*S+s
    w_eff = m[0:1, :] * w2t_ref[0]                              # [hidden, N*S]
    for c in range(1, c_out):
        w_eff = w_eff + m[c:c + 1, :] * w2t_ref[c]
    y = jax.lax.dot_general(bsel_ref[...], w_eff,
                            (((1,), (1,)), ((), ())),           # contract lanes (NT)
                            preferred_element_type=jnp.float32)  # [N, hidden]
    y = jnp.tanh(y + b2_ref[...])

    # ---- fused means | log_var heads: single [N,hidden]@[hidden,2*latent] dot
    heads_ref[...] = (jnp.dot(y, w3_ref[...], preferred_element_type=jnp.float32)
                      + b3_ref[...])


# ----------------------------------------------------------------------------
# Wrapper: static index tables + single pallas_call
# ----------------------------------------------------------------------------
_SUPPORTED_PATTERN = ("Conv", "Relu", "Maxpool", "Flatten", "Linear", "Tanh")


def encoder_forward(x, encoder_layer, layer_params, means_params, logvar_params):
    types = tuple(layer["type"] for layer in encoder_layer)
    if types != _SUPPORTED_PATTERN:
        # TODO(synk): general layer sequences (incl. LocalRespNorm) are not fused.
        raise NotImplementedError(types)

    conv_layer = encoder_layer[0]
    pool_layer = encoder_layer[2]
    assert conv_layer.get("padding", 0) == 0 and pool_layer.get("padding", 0) == 0, \
        "index tables assume padding == 0"

    (conv_w, conv_b), (lin_w, lin_b) = layer_params
    w_m, b_m = means_params
    w_v, b_v = logvar_params

    N, Cin, D, H, W = x.shape
    Cout = conv_w.shape[0]
    ck, cs = conv_layer["kernel_size"], conv_layer["stride"]
    pk, ps = pool_layer["kernel_size"], pool_layer["stride"]
    Dc, Hc, Wc = (convShape(e, ck, cs, 0) for e in (D, H, W))
    Dp, Hp, Wp = (convShape(e, pk, ps, 0) for e in (Dc, Hc, Wc))
    S = Dp * Hp * Wp
    NS = N * S
    n_win = pk ** 3
    T = Cin * ck ** 3
    hidden = lin_w.shape[1]
    latent = w_m.shape[1]
    assert lin_w.shape[0] == Cout * S

    # --- static (numpy) gather / index tables --------------------------------
    dwz, dwy, dwx = np.meshgrid(np.arange(pk), np.arange(pk), np.arange(pk), indexing="ij")
    dw_off = np.stack([dwz.ravel(), dwy.ravel(), dwx.ravel()], axis=1)       # [n_win, 3]
    tz, ty, tx = np.meshgrid(np.arange(ck), np.arange(ck), np.arange(ck), indexing="ij")
    tap = np.stack([tz.ravel(), ty.ravel(), tx.ravel()], axis=1)             # [ck^3, 3]
    pz, py, px = np.meshgrid(np.arange(Dp), np.arange(Hp), np.arange(Wp), indexing="ij")
    pout = np.stack([pz.ravel(), py.ravel(), px.ravel()], axis=1)            # [S, 3]

    cpos = ps * pout[None, :, :] + dw_off[:, None, :]                        # [n_win, S, 3]
    ipos = cs * cpos[:, None, :, :] + tap[None, :, None, :]                  # [n_win, ck^3, S, 3]
    flat_in = (ipos[..., 0] * H + ipos[..., 1]) * W + ipos[..., 2]           # [n_win, ck^3, S]
    gidx = (np.arange(Cin)[None, :, None, None] * (D * H * W)
            + flat_in[:, None, :, :]).reshape(n_win, T, S)                   # [n_win, T, S]
    winflat = (cpos[..., 0] * Hc + cpos[..., 1]) * Wc + cpos[..., 2]         # [n_win, S]

    gidx = jnp.asarray(gidx.astype(np.int32))
    wf = jnp.asarray(np.tile(winflat.astype(np.int32), (1, N)).reshape(n_win, 1, NS))
    bsel = jnp.asarray(np.kron(np.eye(N, dtype=np.float32),
                               np.ones((1, S), np.float32)))                 # [N, N*S]

    def _full(shape):
        return pl.BlockSpec(shape, lambda i: (0,) * len(shape))

    kern = functools.partial(_encoder_kernel, c_out=Cout, n_win=n_win, ns=NS)

    flops = (2 * n_win * Cout * T * NS          # conv
             + 2 * Cout * hidden * NS           # row-scaled weight accumulation
             + 2 * N * NS * hidden              # batch-selection contraction
             + 2 * N * hidden * 2 * latent)     # heads
    bytes_accessed = 4 * (n_win * T * NS + Cout * T + Cout + Cout * hidden * NS
                          + hidden + hidden * 2 * latent + 2 * latent
                          + n_win * NS + N * NS + N * 2 * latent + Cout * NS)

    # TODO(synk): for realistic volumes put the pooled-spatial axis on a
    # 'parallel' grid axis (v7x megacore) and tile col with lane dims %128.
    fused = pl.pallas_call(
        kern,
        grid=(1,),
        in_specs=[
            _full((n_win, T, NS)),
            _full((Cout, T)),
            _full((Cout, 1)),
            _full((Cout, hidden, NS)),
            _full((1, hidden)),
            _full((hidden, 2 * latent)),
            _full((1, 2 * latent)),
            _full((n_win, 1, NS)),
            _full((N, NS)),
        ],
        out_specs=(
            _full((N, 2 * latent)),
            _full((Cout, NS)),
        ),
        out_shape=(
            jax.ShapeDtypeStruct((N, 2 * latent), jnp.float32),
            jax.ShapeDtypeStruct((Cout, NS), jnp.int32),
        ),
        compiler_params=pltpu.CompilerParams(dimension_semantics=("arbitrary",)),
        cost_estimate=pl.CostEstimate(flops=flops, transcendentals=N * hidden,
                                      bytes_accessed=bytes_accessed),
    )

    @jax.jit
    def run(x, conv_w, conv_b, lin_w, lin_b, w_m, b_m, w_v, b_v):
        # im2col gather; batch folded into the lane axis, lane order = (n, s).
        # TODO(synk): move this gather in-kernel (manual DMA) for large volumes.
        col = x.reshape(N, Cin * D * H * W)[:, gidx]              # [N, n_win, T, S]
        col = col.transpose(1, 2, 0, 3).reshape(n_win, T, NS)     # [n_win, T, N*S]
        wcT = conv_w.reshape(Cout, T)
        bc = conv_b.reshape(Cout, 1)
        # Linear weight: per-channel [hidden, S], tiled over batch along lanes.
        w2t = jnp.tile(lin_w.reshape(Cout, S, hidden).transpose(0, 2, 1), (1, 1, N))
        b2 = lin_b.reshape(1, hidden)
        w3 = jnp.concatenate([w_m, w_v], axis=1)                  # [hidden, 2*latent]
        b3 = jnp.concatenate([b_m, b_v]).reshape(1, 2 * latent)
        heads, idx = fused(col, wcT, bc, w2t, b2, w3, b3, wf, bsel)
        means = heads[:, :latent]
        log_vars = heads[:, latent:]
        pool_idx = (idx.reshape(Cout, N, S).transpose(1, 0, 2)
                    .reshape(N, Cout, Dp, Hp, Wp))
        return means, log_vars, pool_idx

    means, log_vars, pool_idx = run(x, conv_w, conv_b, lin_w, lin_b,
                                    w_m, b_m, w_v, b_v)
    return means, log_vars, [pool_idx]


# ----------------------------------------------------------------------------
# Plain-JAX reference (correctness sanity check only)
# ----------------------------------------------------------------------------
def _reference_forward(x, conv_w, conv_b, lin_w, lin_b, w_m, b_m, w_v, b_v, cs, pk, ps):
    r = jax.lax.conv_general_dilated(
        x, conv_w, window_strides=(cs,) * 3, padding="VALID",
        dimension_numbers=("NCDHW", "OIDHW", "NCDHW"))
    r = jnp.maximum(r + conv_b.reshape(1, -1, 1, 1, 1), 0.0)
    N, C, Dc, Hc, Wc = r.shape
    Dp, Hp, Wp = (convShape(e, pk, ps, 0) for e in (Dc, Hc, Wc))
    pooled = None
    for dz in range(pk):
        for dy in range(pk):
            for dx in range(pk):
                win = r[:, :, dz:dz + ps * Dp:ps, dy:dy + ps * Hp:ps, dx:dx + ps * Wp:ps]
                pooled = win if pooled is None else jnp.maximum(pooled, win)
    h = jnp.tanh(pooled.reshape(N, -1) @ lin_w + lin_b)
    means = h @ w_m + b_m
    log_vars = h @ w_v + b_v
    return means, log_vars, pooled, r


# ----------------------------------------------------------------------------
# Deterministic parameter construction + demo run
# ----------------------------------------------------------------------------
def _init_linear(key, fan_in, fan_out, dtype=jnp.float32):
    k1, k2 = jax.random.split(key)
    bound = 1.0 / jnp.sqrt(fan_in)
    w = jax.random.uniform(k1, (fan_in, fan_out), dtype, -bound, bound)   # stored [in, out]
    b = jax.random.uniform(k2, (fan_out,), dtype, -bound, bound)
    return w, b


def _init_conv3d(key, cin, cout, k, dtype=jnp.float32):
    k1, k2 = jax.random.split(key)
    fan_in = cin * k ** 3
    bound = 1.0 / jnp.sqrt(fan_in)
    w = jax.random.uniform(k1, (cout, cin, k, k, k), dtype, -bound, bound)
    b = jax.random.uniform(k2, (cout,), dtype, -bound, bound)
    return w, b


if __name__ == "__main__":
    input_data_shape = {"channel": 1, "shape": [8, 8, 8]}
    encoder_layer = [
        {"type": "Conv", "in_channel": 1, "out_channel": 4,
         "kernel_size": 3, "stride": 1, "padding": 0},
        {"type": "Relu"},
        {"type": "Maxpool", "kernel_size": 2, "stride": 2, "padding": 0},
        {"type": "Flatten", "in_features": [4, 3, 3, 3]},
        {"type": "Linear", "in_features": 108, "out_features": 32},
        {"type": "Tanh"},
    ]
    latent_size = 16

    key = jax.random.PRNGKey(0)
    kx, kc, kl, km, kv = jax.random.split(key, 5)

    conv_w, conv_b = _init_conv3d(kc, 1, 4, 3)
    lin_w, lin_b = _init_linear(kl, 108, 32)
    layer_params = [(conv_w, conv_b), (lin_w, lin_b)]
    means_params = _init_linear(km, 32, latent_size)
    logvar_params = _init_linear(kv, 32, latent_size)

    x = jax.random.normal(kx, (2, 1, 8, 8, 8), dtype=jnp.float32)

    means, log_vars, pool_idx_set = encoder_forward(
        x, encoder_layer, layer_params, means_params, logvar_params)
    pool_idx = pool_idx_set[0]
    jax.block_until_ready(means)
    jax.block_until_ready(log_vars)
    jax.block_until_ready(pool_idx)

    assert means.shape == (2, latent_size)
    assert log_vars.shape == (2, latent_size)
    assert pool_idx.shape == (2, 4, 3, 3, 3)

    # --- correctness sanity check against a plain-JAX reference -------------
    m_ref, lv_ref, pooled_ref, relu_ref = _reference_forward(
        x, conv_w, conv_b, lin_w, lin_b,
        means_params[0], means_params[1], logvar_params[0], logvar_params[1],
        cs=1, pk=2, ps=2)
    assert np.allclose(np.asarray(means), np.asarray(m_ref), atol=3e-2, rtol=3e-2)
    assert np.allclose(np.asarray(log_vars), np.asarray(lv_ref), atol=3e-2, rtol=3e-2)
    # pool indices must point at (numerically) the window maximum
    Nb, Cb = relu_ref.shape[:2]
    r_flat = relu_ref.reshape(Nb, Cb, -1)
    gathered = jnp.take_along_axis(r_flat, pool_idx.reshape(Nb, Cb, -1), axis=-1)
    assert np.allclose(np.asarray(gathered).reshape(pooled_ref.shape),
                       np.asarray(pooled_ref), atol=3e-2, rtol=3e-2)

    print("KERNEL_OK")
</pallas_src>

<mosaic_0001>
module attributes {stable_mosaic.version = 11 : i64} {
  func.func @_encoder_kernel(%arg0: i32, %arg1: memref<8x27x54xf32, #tpu.memory_space<vmem>>, %arg2: memref<4x27xf32, #tpu.memory_space<vmem>>, %arg3: memref<4x1xf32, #tpu.memory_space<vmem>>, %arg4: memref<4x32x54xf32, #tpu.memory_space<vmem>>, %arg5: memref<1x32xf32, #tpu.memory_space<vmem>>, %arg6: memref<32x32xf32, #tpu.memory_space<vmem>>, %arg7: memref<1x32xf32, #tpu.memory_space<vmem>>, %arg8: memref<8x1x54xi32, #tpu.memory_space<vmem>>, %arg9: memref<2x54xf32, #tpu.memory_space<vmem>>, %arg10: memref<2x32xf32, #tpu.memory_space<vmem>>, %arg11: memref<4x54xi32, #tpu.memory_space<vmem>>) attributes {dimension_semantics = [#tpu.dimension_semantics<arbitrary>], iteration_bounds = array<i64: 1>, scalar_prefetch = 0 : i64, scratch_operands = 0 : i64, tpu.core_type = #tpu.core_type<tc>, window_params = [{pipeline_mode = #tpu.pipeline_mode<synchronous>, transform_indices = @transform_0, window_bounds = array<i64: 8, 27, 54>}, {pipeline_mode = #tpu.pipeline_mode<synchronous>, transform_indices = @transform_1, window_bounds = array<i64: 4, 27>}, {pipeline_mode = #tpu.pipeline_mode<synchronous>, transform_indices = @transform_2, window_bounds = array<i64: 4, 1>}, {pipeline_mode = #tpu.pipeline_mode<synchronous>, transform_indices = @transform_3, window_bounds = array<i64: 4, 32, 54>}, {pipeline_mode = #tpu.pipeline_mode<synchronous>, transform_indices = @transform_4, window_bounds = array<i64: 1, 32>}, {pipeline_mode = #tpu.pipeline_mode<synchronous>, transform_indices = @transform_5, window_bounds = array<i64: 32, 32>}, {pipeline_mode = #tpu.pipeline_mode<synchronous>, transform_indices = @transform_6, window_bounds = array<i64: 1, 32>}, {pipeline_mode = #tpu.pipeline_mode<synchronous>, transform_indices = @transform_7, window_bounds = array<i64: 8, 1, 54>}, {pipeline_mode = #tpu.pipeline_mode<synchronous>, transform_indices = @transform_8, window_bounds = array<i64: 2, 54>}, {pipeline_mode = #tpu.pipeline_mode<synchronous>, transform_indices = @transform_9, window_bounds = array<i64: 2, 32>}, {pipeline_mode = #tpu.pipeline_mode<synchronous>, transform_indices = @transform_10, window_bounds = array<i64: 4, 54>}]} {
    %c0 = arith.constant 0 : index
    %c0_0 = arith.constant 0 : index
    %0 = vector.load %arg2[%c0, %c0_0] : memref<4x27xf32, #tpu.memory_space<vmem>>, vector<4x27xf32>
    %c0_1 = arith.constant 0 : index
    %c0_2 = arith.constant 0 : index
    %1 = vector.load %arg3[%c0_1, %c0_2] : memref<4x1xf32, #tpu.memory_space<vmem>>, vector<4x1xf32>
    %2 = vector.shape_cast %1 : vector<4x1xf32> to vector<4x1xf32>
    %3 = vector.broadcast %2 : vector<4x1xf32> to vector<4x54xf32>
    %c0_3 = arith.constant 0 : index
    %c0_4 = arith.constant 0 : index
    %c0_5 = arith.constant 0 : index
    %4 = vector.load %arg1[%c0_3, %c0_4, %c0_5] : memref<8x27x54xf32, #tpu.memory_space<vmem>>, vector<1x27x54xf32>
    %5 = vector.shape_cast %4 : vector<1x27x54xf32> to vector<27x54xf32>
    %cst = arith.constant dense<0.000000e+00> : vector<4x54xf32>
    %6 = tpu.matmul %0, %5, %cst {dimension_numbers = #tpu.dot_dimension_numbers<[1], [0], [0], [1], [0, 0, 1, 1], [], []>} : vector<4x27xf32>, vector<27x54xf32>, vector<4x54xf32> -> vector<4x54xf32>
    %7 = arith.addf %6, %3 : vector<4x54xf32>
    %cst_6 = arith.constant 0.000000e+00 : f32
    %8 = vector.broadcast %cst_6 : f32 to vector<4x54xf32>
    %9 = arith.maximumf %7, %8 : vector<4x54xf32>
    %c0_7 = arith.constant 0 : index
    %c0_8 = arith.constant 0 : index
    %c0_9 = arith.constant 0 : index
    %10 = vector.load %arg8[%c0_7, %c0_8, %c0_9] : memref<8x1x54xi32, #tpu.memory_space<vmem>>, vector<1x1x54xi32>
    %11 = vector.shape_cast %10 : vector<1x1x54xi32> to vector<1x54xi32>
    %12 = vector.shape_cast %11 : vector<1x54xi32> to vector<1x54xi32>
    %13 = vector.broadcast %12 : vector<1x54xi32> to vector<4x54xi32>
    %c1 = arith.constant 1 : index
    %c0_10 = arith.constant 0 : index
    %c0_11 = arith.constant 0 : index
    %14 = vector.load %arg1[%c1, %c0_10, %c0_11] : memref<8x27x54xf32, #tpu.memory_space<vmem>>, vector<1x27x54xf32>
    %15 = vector.shape_cast %14 : vector<1x27x54xf32> to vector<27x54xf32>
    %cst_12 = arith.constant dense<0.000000e+00> : vector<4x54xf32>
    %16 = tpu.matmul %0, %15, %cst_12 {dimension_numbers = #tpu.dot_dimension_numbers<[1], [0], [0], [1], [0, 0, 1, 1], [], []>} : vector<4x27xf32>, vector<27x54xf32>, vector<4x54xf32> -> vector<4x54xf32>
    %17 = arith.addf %16, %3 : vector<4x54xf32>
    %cst_13 = arith.constant 0.000000e+00 : f32
    %18 = vector.broadcast %cst_13 : f32 to vector<4x54xf32>
    %19 = arith.maximumf %17, %18 : vector<4x54xf32>
    %c1_14 = arith.constant 1 : index
    %c0_15 = arith.constant 0 : index
    %c0_16 = arith.constant 0 : index
    %20 = vector.load %arg8[%c1_14, %c0_15, %c0_16] : memref<8x1x54xi32, #tpu.memory_space<vmem>>, vector<1x1x54xi32>
    %21 = vector.shape_cast %20 : vector<1x1x54xi32> to vector<1x54xi32>
    %22 = vector.shape_cast %21 : vector<1x54xi32> to vector<1x54xi32>
    %23 = vector.broadcast %22 : vector<1x54xi32> to vector<4x54xi32>
    %24 = arith.cmpf ogt, %19, %9 : vector<4x54xf32>
    %25 = arith.select %24, %19, %9 : vector<4x54xi1>, vector<4x54xf32>
    %26 = arith.select %24, %23, %13 : vector<4x54xi1>, vector<4x54xi32>
    %c2 = arith.constant 2 : index
    %c0_17 = arith.constant 0 : index
    %c0_18 = arith.constant 0 : index
    %27 = vector.load %arg1[%c2, %c0_17, %c0_18] : memref<8x27x54xf32, #tpu.memory_space<vmem>>, vector<1x27x54xf32>
    %28 = vector.shape_cast %27 : vector<1x27x54xf32> to vector<27x54xf32>
    %cst_19 = arith.constant dense<0.000000e+00> : vector<4x54xf32>
    %29 = tpu.matmul %0, %28, %cst_19 {dimension_numbers = #tpu.dot_dimension_numbers<[1], [0], [0], [1], [0, 0, 1, 1], [], []>} : vector<4x27xf32>, vector<27x54xf32>, vector<4x54xf32> -> vector<4x54xf32>
    %30 = arith.addf %29, %3 : vector<4x54xf32>
    %cst_20 = arith.constant 0.000000e+00 : f32
    %31 = vector.broadcast %cst_20 : f32 to vector<4x54xf32>
    %32 = arith.maximumf %30, %31 : vector<4x54xf32>
    %c2_21 = arith.constant 2 : index
    %c0_22 = arith.constant 0 : index
    %c0_23 = arith.constant 0 : index
    %33 = vector.load %arg8[%c2_21, %c0_22, %c0_23] : memref<8x1x54xi32, #tpu.memory_space<vmem>>, vector<1x1x54xi32>
    %34 = vector.shape_cast %33 : vector<1x1x54xi32> to vector<1x54xi32>
    %35 = vector.shape_cast %34 : vector<1x54xi32> to vector<1x54xi32>
    %36 = vector.broadcast %35 : vector<1x54xi32> to vector<4x54xi32>
    %37 = arith.cmpf ogt, %32, %25 : vector<4x54xf32>
    %38 = arith.select %37, %32, %25 : vector<4x54xi1>, vector<4x54xf32>
    %39 = arith.select %37, %36, %26 : vector<4x54xi1>, vector<4x54xi32>
    %c3 = arith.constant 3 : index
    %c0_24 = arith.constant 0 : index
    %c0_25 = arith.constant 0 : index
    %40 = vector.load %arg1[%c3, %c0_24, %c0_25] : memref<8x27x54xf32, #tpu.memory_space<vmem>>, vector<1x27x54xf32>
    %41 = vector.shape_cast %40 : vector<1x27x54xf32> to vector<27x54xf32>
    %cst_26 = arith.constant dense<0.000000e+00> : vector<4x54xf32>
    %42 = tpu.matmul %0, %41, %cst_26 {dimension_numbers = #tpu.dot_dimension_numbers<[1], [0], [0], [1], [0, 0, 1, 1], [], []>} : vector<4x27xf32>, vector<27x54xf32>, vector<4x54xf32> -> vector<4x54xf32>
    %43 = arith.addf %42, %3 : vector<4x54xf32>
    %cst_27 = arith.constant 0.000000e+00 : f32
    %44 = vector.broadcast %cst_27 : f32 to vector<4x54xf32>
    %45 = arith.maximumf %43, %44 : vector<4x54xf32>
    %c3_28 = arith.constant 3 : index
    %c0_29 = arith.constant 0 : index
    %c0_30 = arith.constant 0 : index
    %46 = vector.load %arg8[%c3_28, %c0_29, %c0_30] : memref<8x1x54xi32, #tpu.memory_space<vmem>>, vector<1x1x54xi32>
    %47 = vector.shape_cast %46 : vector<1x1x54xi32> to vector<1x54xi32>
    %48 = vector.shape_cast %47 : vector<1x54xi32> to vector<1x54xi32>
    %49 = vector.broadcast %48 : vector<1x54xi32> to vector<4x54xi32>
    %50 = arith.cmpf ogt, %45, %38 : vector<4x54xf32>
    %51 = arith.select %50, %45, %38 : vector<4x54xi1>, vector<4x54xf32>
    %52 = arith.select %50, %49, %39 : vector<4x54xi1>, vector<4x54xi32>
    %c4 = arith.constant 4 : index
    %c0_31 = arith.constant 0 : index
    %c0_32 = arith.constant 0 : index
    %53 = vector.load %arg1[%c4, %c0_31, %c0_32] : memref<8x27x54xf32, #tpu.memory_space<vmem>>, vector<1x27x54xf32>
    %54 = vector.shape_cast %53 : vector<1x27x54xf32> to vector<27x54xf32>
    %cst_33 = arith.constant dense<0.000000e+00> : vector<4x54xf32>
    %55 = tpu.matmul %0, %54, %cst_33 {dimension_numbers = #tpu.dot_dimension_numbers<[1], [0], [0], [1], [0, 0, 1, 1], [], []>} : vector<4x27xf32>, vector<27x54xf32>, vector<4x54xf32> -> vector<4x54xf32>
    %56 = arith.addf %55, %3 : vector<4x54xf32>
    %cst_34 = arith.constant 0.000000e+00 : f32
    %57 = vector.broadcast %cst_34 : f32 to vector<4x54xf32>
    %58 = arith.maximumf %56, %57 : vector<4x54xf32>
    %c4_35 = arith.constant 4 : index
    %c0_36 = arith.constant 0 : index
    %c0_37 = arith.constant 0 : index
    %59 = vector.load %arg8[%c4_35, %c0_36, %c0_37] : memref<8x1x54xi32, #tpu.memory_space<vmem>>, vector<1x1x54xi32>
    %60 = vector.shape_cast %59 : vector<1x1x54xi32> to vector<1x54xi32>
    %61 = vector.shape_cast %60 : vector<1x54xi32> to vector<1x54xi32>
    %62 = vector.broadcast %61 : vector<1x54xi32> to vector<4x54xi32>
    %63 = arith.cmpf ogt, %58, %51 : vector<4x54xf32>
    %64 = arith.select %63, %58, %51 : vector<4x54xi1>, vector<4x54xf32>
    %65 = arith.select %63, %62, %52 : vector<4x54xi1>, vector<4x54xi32>
    %c5 = arith.constant 5 : index
    %c0_38 = arith.constant 0 : index
    %c0_39 = arith.constant 0 : index
    %66 = vector.load %arg1[%c5, %c0_38, %c0_39] : memref<8x27x54xf32, #tpu.memory_space<vmem>>, vector<1x27x54xf32>
    %67 = vector.shape_cast %66 : vector<1x27x54xf32> to vector<27x54xf32>
    %cst_40 = arith.constant dense<0.000000e+00> : vector<4x54xf32>
    %68 = tpu.matmul %0, %67, %cst_40 {dimension_numbers = #tpu.dot_dimension_numbers<[1], [0], [0], [1], [0, 0, 1, 1], [], []>} : vector<4x27xf32>, vector<27x54xf32>, vector<4x54xf32> -> vector<4x54xf32>
    %69 = arith.addf %68, %3 : vector<4x54xf32>
    %cst_41 = arith.constant 0.000000e+00 : f32
    %70 = vector.broadcast %cst_41 : f32 to vector<4x54xf32>
    %71 = arith.maximumf %69, %70 : vector<4x54xf32>
    %c5_42 = arith.constant 5 : index
    %c0_43 = arith.constant 0 : index
    %c0_44 = arith.constant 0 : index
    %72 = vector.load %arg8[%c5_42, %c0_43, %c0_44] : memref<8x1x54xi32, #tpu.memory_space<vmem>>, vector<1x1x54xi32>
    %73 = vector.shape_cast %72 : vector<1x1x54xi32> to vector<1x54xi32>
    %74 = vector.shape_cast %73 : vector<1x54xi32> to vector<1x54xi32>
    %75 = vector.broadcast %74 : vector<1x54xi32> to vector<4x54xi32>
    %76 = arith.cmpf ogt, %71, %64 : vector<4x54xf32>
    %77 = arith.select %76, %71, %64 : vector<4x54xi1>, vector<4x54xf32>
    %78 = arith.select %76, %75, %65 : vector<4x54xi1>, vector<4x54xi32>
    %c6 = arith.constant 6 : index
    %c0_45 = arith.constant 0 : index
    %c0_46 = arith.constant 0 : index
    %79 = vector.load %arg1[%c6, %c0_45, %c0_46] : memref<8x27x54xf32, #tpu.memory_space<vmem>>, vector<1x27x54xf32>
    %80 = vector.shape_cast %79 : vector<1x27x54xf32> to vector<27x54xf32>
    %cst_47 = arith.constant dense<0.000000e+00> : vector<4x54xf32>
    %81 = tpu.matmul %0, %80, %cst_47 {dimension_numbers = #tpu.dot_dimension_numbers<[1], [0], [0], [1], [0, 0, 1, 1], [], []>} : vector<4x27xf32>, vector<27x54xf32>, vector<4x54xf32> -> vector<4x54xf32>
    %82 = arith.addf %81, %3 : vector<4x54xf32>
    %cst_48 = arith.constant 0.000000e+00 : f32
    %83 = vector.broadcast %cst_48 : f32 to vector<4x54xf32>
    %84 = arith.maximumf %82, %83 : vector<4x54xf32>
    %c6_49 = arith.constant 6 : index
    %c0_50 = arith.constant 0 : index
    %c0_51 = arith.constant 0 : index
    %85 = vector.load %arg8[%c6_49, %c0_50, %c0_51] : memref<8x1x54xi32, #tpu.memory_space<vmem>>, vector<1x1x54xi32>
    %86 = vector.shape_cast %85 : vector<1x1x54xi32> to vector<1x54xi32>
    %87 = vector.shape_cast %86 : vector<1x54xi32> to vector<1x54xi32>
    %88 = vector.broadcast %87 : vector<1x54xi32> to vector<4x54xi32>
    %89 = arith.cmpf ogt, %84, %77 : vector<4x54xf32>
    %90 = arith.select %89, %84, %77 : vector<4x54xi1>, vector<4x54xf32>
    %91 = arith.select %89, %88, %78 : vector<4x54xi1>, vector<4x54xi32>
    %c7 = arith.constant 7 : index
    %c0_52 = arith.constant 0 : index
    %c0_53 = arith.constant 0 : index
    %92 = vector.load %arg1[%c7, %c0_52, %c0_53] : memref<8x27x54xf32, #tpu.memory_space<vmem>>, vector<1x27x54xf32>
    %93 = vector.shape_cast %92 : vector<1x27x54xf32> to vector<27x54xf32>
    %cst_54 = arith.constant dense<0.000000e+00> : vector<4x54xf32>
    %94 = tpu.matmul %0, %93, %cst_54 {dimension_numbers = #tpu.dot_dimension_numbers<[1], [0], [0], [1], [0, 0, 1, 1], [], []>} : vector<4x27xf32>, vector<27x54xf32>, vector<4x54xf32> -> vector<4x54xf32>
    %95 = arith.addf %94, %3 : vector<4x54xf32>
    %cst_55 = arith.constant 0.000000e+00 : f32
    %96 = vector.broadcast %cst_55 : f32 to vector<4x54xf32>
    %97 = arith.maximumf %95, %96 : vector<4x54xf32>
    %c7_56 = arith.constant 7 : index
    %c0_57 = arith.constant 0 : index
    %c0_58 = arith.constant 0 : index
    %98 = vector.load %arg8[%c7_56, %c0_57, %c0_58] : memref<8x1x54xi32, #tpu.memory_space<vmem>>, vector<1x1x54xi32>
    %99 = vector.shape_cast %98 : vector<1x1x54xi32> to vector<1x54xi32>
    %100 = vector.shape_cast %99 : vector<1x54xi32> to vector<1x54xi32>
    %101 = vector.broadcast %100 : vector<1x54xi32> to vector<4x54xi32>
    %102 = arith.cmpf ogt, %97, %90 : vector<4x54xf32>
    %103 = arith.select %102, %97, %90 : vector<4x54xi1>, vector<4x54xf32>
    %104 = arith.select %102, %101, %91 : vector<4x54xi1>, vector<4x54xi32>
    %c0_59 = arith.constant 0 : index
    %c0_60 = arith.constant 0 : index
    %105 = vector.load %arg11[%c0_59, %c0_60] : memref<4x54xi32, #tpu.memory_space<vmem>>, vector<4x54xi32>
    tpu.vector_store %arg11[%c0_59, %c0_60], %104 {strides = array<i32>} : memref<4x54xi32, #tpu.memory_space<vmem>>, vector<4x54xi32>,
    %106 = vector.extract_strided_slice %103 {offsets = [0, 0], sizes = [1, 54], strides = [1, 1]} : vector<4x54xf32> to vector<1x54xf32>
    %c0_61 = arith.constant 0 : index
    %c0_62 = arith.constant 0 : index
    %c0_63 = arith.constant 0 : index
    %107 = vector.load %arg4[%c0_61, %c0_62, %c0_63] : memref<4x32x54xf32, #tpu.memory_space<vmem>>, vector<1x32x54xf32>
    %108 = vector.shape_cast %107 : vector<1x32x54xf32> to vector<32x54xf32>
    %109 = vector.broadcast %106 : vector<1x54xf32> to vector<32x54xf32>
    %110 = arith.mulf %109, %108 : vector<32x54xf32>
    %111 = vector.extract_strided_slice %103 {offsets = [1, 0], sizes = [1, 54], strides = [1, 1]} : vector<4x54xf32> to vector<1x54xf32>
    %c1_64 = arith.constant 1 : index
    %c0_65 = arith.constant 0 : index
    %c0_66 = arith.constant 0 : index
    %112 = vector.load %arg4[%c1_64, %c0_65, %c0_66] : memref<4x32x54xf32, #tpu.memory_space<vmem>>, vector<1x32x54xf32>
    %113 = vector.shape_cast %112 : vector<1x32x54xf32> to vector<32x54xf32>
    %114 = vector.broadcast %111 : vector<1x54xf32> to vector<32x54xf32>
    %115 = arith.mulf %114, %113 : vector<32x54xf32>
    %116 = arith.addf %110, %115 : vector<32x54xf32>
    %117 = vector.extract_strided_slice %103 {offsets = [2, 0], sizes = [1, 54], strides = [1, 1]} : vector<4x54xf32> to vector<1x54xf32>
    %c2_67 = arith.constant 2 : index
    %c0_68 = arith.constant 0 : index
    %c0_69 = arith.constant 0 : index
    %118 = vector.load %arg4[%c2_67, %c0_68, %c0_69] : memref<4x32x54xf32, #tpu.memory_space<vmem>>, vector<1x32x54xf32>
    %119 = vector.shape_cast %118 : vector<1x32x54xf32> to vector<32x54xf32>
    %120 = vector.broadcast %117 : vector<1x54xf32> to vector<32x54xf32>
    %121 = arith.mulf %120, %119 : vector<32x54xf32>
    %122 = arith.addf %116, %121 : vector<32x54xf32>
    %123 = vector.extract_strided_slice %103 {offsets = [3, 0], sizes = [1, 54], strides = [1, 1]} : vector<4x54xf32> to vector<1x54xf32>
    %c3_70 = arith.constant 3 : index
    %c0_71 = arith.constant 0 : index
    %c0_72 = arith.constant 0 : index
    %124 = vector.load %arg4[%c3_70, %c0_71, %c0_72] : memref<4x32x54xf32, #tpu.memory_space<vmem>>, vector<1x32x54xf32>
    %125 = vector.shape_cast %124 : vector<1x32x54xf32> to vector<32x54xf32>
    %126 = vector.broadcast %123 : vector<1x54xf32> to vector<32x54xf32>
    %127 = arith.mulf %126, %125 : vector<32x54xf32>
    %128 = arith.addf %122, %127 : vector<32x54xf32>
    %c0_73 = arith.constant 0 : index
    %c0_74 = arith.constant 0 : index
    %129 = vector.load %arg9[%c0_73, %c0_74] : memref<2x54xf32, #tpu.memory_space<vmem>>, vector<2x54xf32>
    %cst_75 = arith.constant dense<0.000000e+00> : vector<2x32xf32>
    %130 = tpu.matmul %129, %128, %cst_75 {dimension_numbers = #tpu.dot_dimension_numbers<[1], [1], [0], [0], [0, 0, 1, 0], [], []>} : vector<2x54xf32>, vector<32x54xf32>, vector<2x32xf32> -> vector<2x32xf32>
    %c0_76 = arith.constant 0 : index
    %c0_77 = arith.constant 0 : index
    %131 = vector.load %arg5[%c0_76, %c0_77] : memref<1x32xf32, #tpu.memory_space<vmem>>, vector<1x32xf32>
    %132 = vector.broadcast %131 : vector<1x32xf32> to vector<2x32xf32>
    %133 = arith.addf %130, %132 : vector<2x32xf32>
    %134 = math.tanh %133 : vector<2x32xf32>
    %c0_78 = arith.constant 0 : index
    %c0_79 = arith.constant 0 : index
    %135 = vector.load %arg6[%c0_78, %c0_79] : memref<32x32xf32, #tpu.memory_space<vmem>>, vector<32x32xf32>
    %cst_80 = arith.constant dense<0.000000e+00> : vector<2x32xf32>
    %136 = tpu.matmul %134, %135, %cst_80 {dimension_numbers = #tpu.dot_dimension_numbers<[1], [0], [0], [1], [0, 0, 1, 1], [], []>} : vector<2x32xf32>, vector<32x32xf32>, vector<2x32xf32> -> vector<2x32xf32>
    %c0_81 = arith.constant 0 : index
    %c0_82 = arith.constant 0 : index
    %137 = vector.load %arg7[%c0_81, %c0_82] : memref<1x32xf32, #tpu.memory_space<vmem>>, vector<1x32xf32>
    %138 = vector.broadcast %137 : vector<1x32xf32> to vector<2x32xf32>
    %139 = arith.addf %136, %138 : vector<2x32xf32>
    %c0_83 = arith.constant 0 : index
    %c0_84 = arith.constant 0 : index
    %140 = vector.load %arg10[%c0_83, %c0_84] : memref<2x32xf32, #tpu.memory_space<vmem>>, vector<2x32xf32>
    tpu.vector_store %arg10[%c0_83, %c0_84], %139 {strides = array<i32>} : memref<2x32xf32, #tpu.memory_space<vmem>>, vector<2x32xf32>,
    return
  }
  func.func @transform_0(%arg0: i32) -> (i32, i32, i32) {
    %c0_i32 = arith.constant 0 : i32
    %c0_i32_0 = arith.constant 0 : i32
    %c0_i32_1 = arith.constant 0 : i32
    %c0_i32_2 = arith.constant 0 : i32
    return %c0_i32, %c0_i32_0, %c0_i32_1 : i32, i32, i32
  }
  func.func @transform_1(%arg0: i32) -> (i32, i32) {
    %c0_i32 = arith.constant 0 : i32
    %c0_i32_0 = arith.constant 0 : i32
    %c0_i32_1 = arith.constant 0 : i32
    return %c0_i32, %c0_i32_0 : i32, i32
  }
  func.func @transform_2(%arg0: i32) -> (i32, i32) {
    %c0_i32 = arith.constant 0 : i32
    %c0_i32_0 = arith.constant 0 : i32
    %c0_i32_1 = arith.constant 0 : i32
    return %c0_i32, %c0_i32_0 : i32, i32
  }
  func.func @transform_3(%arg0: i32) -> (i32, i32, i32) {
    %c0_i32 = arith.constant 0 : i32
    %c0_i32_0 = arith.constant 0 : i32
    %c0_i32_1 = arith.constant 0 : i32
    %c0_i32_2 = arith.constant 0 : i32
    return %c0_i32, %c0_i32_0, %c0_i32_1 : i32, i32, i32
  }
  func.func @transform_4(%arg0: i32) -> (i32, i32) {
    %c0_i32 = arith.constant 0 : i32
    %c0_i32_0 = arith.constant 0 : i32
    %c0_i32_1 = arith.constant 0 : i32
    return %c0_i32, %c0_i32_0 : i32, i32
  }
  func.func @transform_5(%arg0: i32) -> (i32, i32) {
    %c0_i32 = arith.constant 0 : i32
    %c0_i32_0 = arith.constant 0 : i32
    %c0_i32_1 = arith.constant 0 : i32
    return %c0_i32, %c0_i32_0 : i32, i32
  }
  func.func @transform_6(%arg0: i32) -> (i32, i32) {
    %c0_i32 = arith.constant 0 : i32
    %c0_i32_0 = arith.constant 0 : i32
    %c0_i32_1 = arith.constant 0 : i32
    return %c0_i32, %c0_i32_0 : i32, i32
  }
  func.func @transform_7(%arg0: i32) -> (i32, i32, i32) {
    %c0_i32 = arith.constant 0 : i32
    %c0_i32_0 = arith.constant 0 : i32
    %c0_i32_1 = arith.constant 0 : i32
    %c0_i32_2 = arith.constant 0 : i32
    return %c0_i32, %c0_i32_0, %c0_i32_1 : i32, i32, i32
  }
  func.func @transform_8(%arg0: i32) -> (i32, i32) {
    %c0_i32 = arith.constant 0 : i32
    %c0_i32_0 = arith.constant 0 : i32
    %c0_i32_1 = arith.constant 0 : i32
    return %c0_i32, %c0_i32_0 : i32, i32
  }
  func.func @transform_9(%arg0: i32) -> (i32, i32) {
    %c0_i32 = arith.constant 0 : i32
    %c0_i32_0 = arith.constant 0 : i32
    %c0_i32_1 = arith.constant 0 : i32
    return %c0_i32, %c0_i32_0 : i32, i32
  }
  func.func @transform_10(%arg0: i32) -> (i32, i32) {
    %c0_i32 = arith.constant 0 : i32
    %c0_i32_0 = arith.constant 0 : i32
    %c0_i32_1 = arith.constant 0 : i32
    return %c0_i32, %c0_i32_0 : i32, i32
  }
}

</mosaic_0001>

<llo_original>
// kernel: tile.9
$region0: #{tile.9}
  %s0 = inlined_call_operand.vmem [shape: f32[4,32,2,27], index: 0, kind: input, shape index: {}]
  %s1 = inlined_call_operand.vmem [shape: f32[4,32,54], index: 1, kind: output, shape index: {}]
  $region1: #{tile.9} parent=0
    #allocation0 [shape = 'u8[524288]{0}', space=vmem, size = 0x80000, scoped, tag = 'scoped mem for input reshape']
    %s3 = sshllo.u32 0, 2
    %s4 = smul.addr 2, 127
    %s5 = scalar_lea.vmem %s0, %s4
    %v6 = vld [vmem:[%s5] sm:%s3]
    %s7 = scalar_lea.vmem [#allocation0], 1016
    %8 = vst [vmem:[%s7] sm:%s3] %v6
    %s9 = smul.addr 2, 126
    %s10 = scalar_lea.vmem %s0, %s9
    %v11 = vld [vmem:[%s10] sm:%s3]
    %s12 = scalar_lea.vmem [#allocation0], 1008
    %13 = vst [vmem:[%s12] sm:%s3] %v11
    %s14 = smul.addr 2, 125
    %s15 = scalar_lea.vmem %s0, %s14
    %v16 = vld [vmem:[%s15] sm:%s3]
    %s17 = scalar_lea.vmem [#allocation0], 1000
    %18 = vst [vmem:[%s17] sm:%s3] %v16
    %s19 = smul.addr 2, 124
    %s20 = scalar_lea.vmem %s0, %s19
    %v21 = vld [vmem:[%s20] sm:%s3]
    %s22 = scalar_lea.vmem [#allocation0], 992
    %23 = vst [vmem:[%s22] sm:%s3] %v21
    %s24 = smul.addr 2, 123
    %s25 = scalar_lea.vmem %s0, %s24
    %v26 = vld [vmem:[%s25] sm:%s3]
    %s27 = scalar_lea.vmem [#allocation0], 984
    %28 = vst [vmem:[%s27] sm:%s3] %v26
    %s29 = smul.addr 2, 122
    %s30 = scalar_lea.vmem %s0, %s29
    %v31 = vld [vmem:[%s30] sm:%s3]
    %s32 = scalar_lea.vmem [#allocation0], 976
    %33 = vst [vmem:[%s32] sm:%s3] %v31
    %s34 = smul.addr 2, 121
    %s35 = scalar_lea.vmem %s0, %s34
    %v36 = vld [vmem:[%s35] sm:%s3]
    %s37 = scalar_lea.vmem [#allocation0], 968
    %38 = vst [vmem:[%s37] sm:%s3] %v36
    %s39 = smul.addr 2, 120
    %s40 = scalar_lea.vmem %s0, %s39
    %v41 = vld [vmem:[%s40] sm:%s3]
    %s42 = scalar_lea.vmem [#allocation0], 960
    %43 = vst [vmem:[%s42] sm:%s3] %v41
    %s44 = smul.addr 2, 119
    %s45 = scalar_lea.vmem %s0, %s44
    %v46 = vld [vmem:[%s45] sm:%s3]
    %s47 = scalar_lea.vmem [#allocation0], 952
    %48 = vst [vmem:[%s47] sm:%s3] %v46
    %s49 = smul.addr 2, 118
    %s50 = scalar_lea.vmem %s0, %s49
    %v51 = vld [vmem:[%s50] sm:%s3]
    %s52 = scalar_lea.vmem [#allocation0], 944
    %53 = vst [vmem:[%s52] sm:%s3] %v51
    %s54 = smul.addr 2, 117
    %s55 = scalar_lea.vmem %s0, %s54
    %v56 = vld [vmem:[%s55] sm:%s3]
    %s57 = scalar_lea.vmem [#allocation0], 936
    %58 = vst [vmem:[%s57] sm:%s3] %v56
    %s59 = smul.addr 2, 116
    %s60 = scalar_lea.vmem %s0, %s59
    %v61 = vld [vmem:[%s60] sm:%s3]
    %s62 = scalar_lea.vmem [#allocation0], 928
    %63 = vst [vmem:[%s62] sm:%s3] %v61
    %s64 = smul.addr 2, 115
    %s65 = scalar_lea.vmem %s0, %s64
    %v66 = vld [vmem:[%s65] sm:%s3]
    %s67 = scalar_lea.vmem [#allocation0], 920
    %68 = vst [vmem:[%s67] sm:%s3] %v66
    %s69 = smul.addr 2, 114
    %s70 = scalar_lea.vmem %s0, %s69
    %v71 = vld [vmem:[%s70] sm:%s3]
    %s72 = scalar_lea.vmem [#allocation0], 912
    %73 = vst [vmem:[%s72] sm:%s3] %v71
    %s74 = smul.addr 2, 113
    %s75 = scalar_lea.vmem %s0, %s74
    %v76 = vld [vmem:[%s75] sm:%s3]
    %s77 = scalar_lea.vmem [#allocation0], 904
    %78 = vst [vmem:[%s77] sm:%s3] %v76
    %s79 = smul.addr 2, 112
    %s80 = scalar_lea.vmem %s0, %s79
    %v81 = vld [vmem:[%s80] sm:%s3]
    %s82 = scalar_lea.vmem [#allocation0], 896
    %83 = vst [vmem:[%s82] sm:%s3] %v81
    %s84 = smul.addr 2, 111
    %s85 = scalar_lea.vmem %s0, %s84
    %v86 = vld [vmem:[%s85] sm:%s3]
    %s87 = scalar_lea.vmem [#allocation0], 888
    %88 = vst [vmem:[%s87] sm:%s3] %v86
    %s89 = smul.addr 2, 110
    %s90 = scalar_lea.vmem %s0, %s89
    %v91 = vld [vmem:[%s90] sm:%s3]
    %s92 = scalar_lea.vmem [#allocation0], 880
    %93 = vst [vmem:[%s92] sm:%s3] %v91
    %s94 = smul.addr 2, 109
    %s95 = scalar_lea.vmem %s0, %s94
    %v96 = vld [vmem:[%s95] sm:%s3]
    %s97 = scalar_lea.vmem [#allocation0], 872
    %98 = vst [vmem:[%s97] sm:%s3] %v96
    %s99 = smul.addr 2, 108
    %s100 = scalar_lea.vmem %s0, %s99
    %v101 = vld [vmem:[%s100] sm:%s3]
    %s102 = scalar_lea.vmem [#allocation0], 864
    %103 = vst [vmem:[%s102] sm:%s3] %v101
    %s104 = smul.addr 2, 107
    %s105 = scalar_lea.vmem %s0, %s104
    %v106 = vld [vmem:[%s105] sm:%s3]
    %s107 = scalar_lea.vmem [#allocation0], 856
    %108 = vst [vmem:[%s107] sm:%s3] %v106
    %s109 = smul.addr 2, 106
    %s110 = scalar_lea.vmem %s0, %s109
    %v111 = vld [vmem:[%s110] sm:%s3]
    %s112 = scalar_lea.vmem [#allocation0], 848
    %113 = vst [vmem:[%s112] sm:%s3] %v111
    %s114 = smul.addr 2, 105
    %s115 = scalar_lea.vmem %s0, %s114
    %v116 = vld [vmem:[%s115] sm:%s3]
    %s117 = scalar_lea.vmem [#allocation0], 840
    %118 = vst [vmem:[%s117] sm:%s3] %v116
    %s119 = smul.addr 2, 104
    %s120 = scalar_lea.vmem %s0, %s119
    %v121 = vld [vmem:[%s120] sm:%s3]
    %s122 = scalar_lea.vmem [#allocation0], 832
    %123 = vst [vmem:[%s122] sm:%s3] %v121
    %s124 = smul.addr 2, 103
    %s125 = scalar_lea.vmem %s0, %s124
    %v126 = vld [vmem:[%s125] sm:%s3]
    %s127 = scalar_lea.vmem [#allocation0], 824
    %128 = vst [vmem:[%s127] sm:%s3] %v126
    %s129 = smul.addr 2, 102
    %s130 = scalar_lea.vmem %s0, %s129
    %v131 = vld [vmem:[%s130] sm:%s3]
    %s132 = scalar_lea.vmem [#allocation0], 816
    %133 = vst [vmem:[%s132] sm:%s3] %v131
    %s134 = smul.addr 2, 101
    %s135 = scalar_lea.vmem %s0, %s134
    %v136 = vld [vmem:[%s135] sm:%s3]
    %s137 = scalar_lea.vmem [#allocation0], 808
    %138 = vst [vmem:[%s137] sm:%s3] %v136
    %s139 = smul.addr 2, 100
    %s140 = scalar_lea.vmem %s0, %s139
    %v141 = vld [vmem:[%s140] sm:%s3]
    %s142 = scalar_lea.vmem [#allocation0], 800
    %143 = vst [vmem:[%s142] sm:%s3] %v141
    %s144 = smul.addr 2, 99
    %s145 = scalar_lea.vmem %s0, %s144
    %v146 = vld [vmem:[%s145] sm:%s3]
    %s147 = scalar_lea.vmem [#allocation0], 792
    %148 = vst [vmem:[%s147] sm:%s3] %v146
    %s149 = smul.addr 2, 98
    %s150 = scalar_lea.vmem %s0, %s149
    %v151 = vld [vmem:[%s150] sm:%s3]
    %s152 = scalar_lea.vmem [#allocation0], 784
    %153 = vst [vmem:[%s152] sm:%s3] %v151
    %s154 = smul.addr 2, 97
    %s155 = scalar_lea.vmem %s0, %s154
    %v156 = vld [vmem:[%s155] sm:%s3]
    %s157 = scalar_lea.vmem [#allocation0], 776
    %158 = vst [vmem:[%s157] sm:%s3] %v156
    %s159 = smul.addr 2, 96
    %s160 = scalar_lea.vmem %s0, %s159
    %v161 = vld [vmem:[%s160] sm:%s3]
    %s162 = scalar_lea.vmem [#allocation0], 768
    %163 = vst [vmem:[%s162] sm:%s3] %v161
    %s164 = smul.addr 2, 95
    %s165 = scalar_lea.vmem %s0, %s164
    %v166 = vld [vmem:[%s165] sm:%s3]
    %s167 = scalar_lea.vmem [#allocation0], 760
    %168 = vst [vmem:[%s167] sm:%s3] %v166
    %s169 = smul.addr 2, 94
    %s170 = scalar_lea.vmem %s0, %s169
    %v171 = vld [vmem:[%s170] sm:%s3]
    %s172 = scalar_lea.vmem [#allocation0], 752
    %173 = vst [vmem:[%s172] sm:%s3] %v171
    %s174 = smul.addr 2, 93
    %s175 = scalar_lea.vmem %s0, %s174
    %v176 = vld [vmem:[%s175] sm:%s3]
    %s177 = scalar_lea.vmem [#allocation0], 744
    %178 = vst [vmem:[%s177] sm:%s3] %v176
    %s179 = smul.addr 2, 92
    %s180 = scalar_lea.vmem %s0, %s179
    %v181 = vld [vmem:[%s180] sm:%s3]
    %s182 = scalar_lea.vmem [#allocation0], 736
    %183 = vst [vmem:[%s182] sm:%s3] %v181
    %s184 = smul.addr 2, 91
    %s185 = scalar_lea.vmem %s0, %s184
    %v186 = vld [vmem:[%s185] sm:%s3]
    %s187 = scalar_lea.vmem [#allocation0], 728
    %188 = vst [vmem:[%s187] sm:%s3] %v186
    %s189 = smul.addr 2, 90
    %s190 = scalar_lea.vmem %s0, %s189
    %v191 = vld [vmem:[%s190] sm:%s3]
    %s192 = scalar_lea.vmem [#allocation0], 720
    %193 = vst [vmem:[%s192] sm:%s3] %v191
    %s194 = smul.addr 2, 89
    %s195 = scalar_lea.vmem %s0, %s194
    %v196 = vld [vmem:[%s195] sm:%s3]
    %s197 = scalar_lea.vmem [#allocation0], 712
    %198 = vst [vmem:[%s197] sm:%s3] %v196
    %s199 = smul.addr 2, 88
    %s200 = scalar_lea.vmem %s0, %s199
    %v201 = vld [vmem:[%s200] sm:%s3]
    %s202 = scalar_lea.vmem [#allocation0], 704
    %203 = vst [vmem:[%s202] sm:%s3] %v201
    %s204 = smul.addr 2, 87
    %s205 = scalar_lea.vmem %s0, %s204
    %v206 = vld [vmem:[%s205] sm:%s3]
    %s207 = scalar_lea.vmem [#allocation0], 696
    %208 = vst [vmem:[%s207] sm:%s3] %v206
    %s209 = smul.addr 2, 86
    %s210 = scalar_lea.vmem %s0, %s209
    %v211 = vld [vmem:[%s210] sm:%s3]
    %s212 = scalar_lea.vmem [#allocation0], 688
    %213 = vst [vmem:[%s212] sm:%s3] %v211
    %s214 = smul.addr 2, 85
    %s215 = scalar_lea.vmem %s0, %s214
    %v216 = vld [vmem:[%s215] sm:%s3]
    %s217 = scalar_lea.vmem [#allocation0], 680
    %218 = vst [vmem:[%s217] sm:%s3] %v216
    %s219 = smul.addr 2, 84
    %s220 = scalar_lea.vmem %s0, %s219
    %v221 = vld [vmem:[%s220] sm:%s3]
    %s222 = scalar_lea.vmem [#allocation0], 672
    %223 = vst [vmem:[%s222] sm:%s3] %v221
    %s224 = smul.addr 2, 83
    %s225 = scalar_lea.vmem %s0, %s224
    %v226 = vld [vmem:[%s225] sm:%s3]
    %s227 = scalar_lea.vmem [#allocation0], 664
    %228 = vst [vmem:[%s227] sm:%s3] %v226
    %s229 = smul.addr 2, 82
    %s230 = scalar_lea.vmem %s0, %s229
    %v231 = vld [vmem:[%s230] sm:%s3]
    %s232 = scalar_lea.vmem [#allocation0], 656
    %233 = vst [vmem:[%s232] sm:%s3] %v231
    %s234 = smul.addr 2, 81
    %s235 = scalar_lea.vmem %s0, %s234
    %v236 = vld [vmem:[%s235] sm:%s3]
    %s237 = scalar_lea.vmem [#allocation0], 648
    %238 = vst [vmem:[%s237] sm:%s3] %v236
    %s239 = smul.addr 2, 80
    %s240 = scalar_lea.vmem %s0, %s239
    %v241 = vld [vmem:[%s240] sm:%s3]
    %s242 = scalar_lea.vmem [#allocation0], 640
    %243 = vst [vmem:[%s242] sm:%s3] %v241
    %s244 = smul.addr 2, 79
    %s245 = scalar_lea.vmem %s0, %s244
    %v246 = vld [vmem:[%s245] sm:%s3]
    %s247 = scalar_lea.vmem [#allocation0], 632
    %248 = vst [vmem:[%s247] sm:%s3] %v246
    %s249 = smul.addr 2, 78
    %s250 = scalar_lea.vmem %s0, %s249
    %v251 = vld [vmem:[%s250] sm:%s3]
    %s252 = scalar_lea.vmem [#allocation0], 624
    %253 = vst [vmem:[%s252] sm:%s3] %v251
    %s254 = smul.addr 2, 77
    %s255 = scalar_lea.vmem %s0, %s254
    %v256 = vld [vmem:[%s255] sm:%s3]
    %s257 = scalar_lea.vmem [#allocation0], 616
    %258 = vst [vmem:[%s257] sm:%s3] %v256
    %s259 = smul.addr 2, 76
    %s260 = scalar_lea.vmem %s0, %s259
    %v261 = vld [vmem:[%s260] sm:%s3]
    %s262 = scalar_lea.vmem [#allocation0], 608
    %263 = vst [vmem:[%s262] sm:%s3] %v261
    %s264 = smul.addr 2, 75
    %s265 = scalar_lea.vmem %s0, %s264
    %v266 = vld [vmem:[%s265] sm:%s3]
    %s267 = scalar_lea.vmem [#allocation0], 600
    %268 = vst [vmem:[%s267] sm:%s3] %v266
    %s269 = smul.addr 2, 74
    %s270 = scalar_lea.vmem %s0, %s269
    %v271 = vld [vmem:[%s270] sm:%s3]
    %s272 = scalar_lea.vmem [#allocation0], 592
    %273 = vst [vmem:[%s272] sm:%s3] %v271
    %s274 = smul.addr 2, 73
    %s275 = scalar_lea.vmem %s0, %s274
    %v276 = vld [vmem:[%s275] sm:%s3]
    %s277 = scalar_lea.vmem [#allocation0], 584
    %278 = vst [vmem:[%s277] sm:%s3] %v276
    %s279 = smul.addr 2, 72
    %s280 = scalar_lea.vmem %s0, %s279
    %v281 = vld [vmem:[%s280] sm:%s3]
    %s282 = scalar_lea.vmem [#allocation0], 576
    %283 = vst [vmem:[%s282] sm:%s3] %v281
    %s284 = smul.addr 2, 71
    %s285 = scalar_lea.vmem %s0, %s284
    %v286 = vld [vmem:[%s285] sm:%s3]
    %s287 = scalar_lea.vmem [#allocation0], 568
    %288 = vst [vmem:[%s287] sm:%s3] %v286
    %s289 = smul.addr 2, 70
    %s290 = scalar_lea.vmem %s0, %s289
    %v291 = vld [vmem:[%s290] sm:%s3]
    %s292 = scalar_lea.vmem [#allocation0], 560
    %293 = vst [vmem:[%s292] sm:%s3] %v291
    %s294 = smul.addr 2, 69
    %s295 = scalar_lea.vmem %s0, %s294
    %v296 = vld [vmem:[%s295] sm:%s3]
    %s297 = scalar_lea.vmem [#allocation0], 552
    %298 = vst [vmem:[%s297] sm:%s3] %v296
    %s299 = smul.addr 2, 68
    %s300 = scalar_lea.vmem %s0, %s299
    %v301 = vld [vmem:[%s300] sm:%s3]
    %s302 = scalar_lea.vmem [#allocation0], 544
    %303 = vst [vmem:[%s302] sm:%s3] %v301
    %s304 = smul.addr 2, 67
    %s305 = scalar_lea.vmem %s0, %s304
    %v306 = vld [vmem:[%s305] sm:%s3]
    %s307 = scalar_lea.vmem [#allocation0], 536
    %308 = vst [vmem:[%s307] sm:%s3] %v306
    %s309 = smul.addr 2, 66
    %s310 = scalar_lea.vmem %s0, %s309
    %v311 = vld [vmem:[%s310] sm:%s3]
    %s312 = scalar_lea.vmem [#allocation0], 528
    %313 = vst [vmem:[%s312] sm:%s3] %v311
    %s314 = smul.addr 2, 65
    %s315 = scalar_lea.vmem %s0, %s314
    %v316 = vld [vmem:[%s315] sm:%s3]
    %s317 = scalar_lea.vmem [#allocation0], 520
    %318 = vst [vmem:[%s317] sm:%s3] %v316
    %s319 = smul.addr 2, 64
    %s320 = scalar_lea.vmem %s0, %s319
    %v321 = vld [vmem:[%s320] sm:%s3]
    %s322 = scalar_lea.vmem [#allocation0], 512
    %323 = vst [vmem:[%s322] sm:%s3] %v321
    %s324 = smul.addr 2, 63
    %s325 = scalar_lea.vmem %s0, %s324
    %v326 = vld [vmem:[%s325] sm:%s3]
    %s327 = scalar_lea.vmem [#allocation0], 504
    %328 = vst [vmem:[%s327] sm:%s3] %v326
    %s329 = smul.addr 2, 62
    %s330 = scalar_lea.vmem %s0, %s329
    %v331 = vld [vmem:[%s330] sm:%s3]
    %s332 = scalar_lea.vmem [#allocation0], 496
    %333 = vst [vmem:[%s332] sm:%s3] %v331
    %s334 = smul.addr 2, 61
    %s335 = scalar_lea.vmem %s0, %s334
    %v336 = vld [vmem:[%s335] sm:%s3]
    %s337 = scalar_lea.vmem [#allocation0], 488
    %338 = vst [vmem:[%s337] sm:%s3] %v336
    %s339 = smul.addr 2, 60
    %s340 = scalar_lea.vmem %s0, %s339
    %v341 = vld [vmem:[%s340] sm:%s3]
    %s342 = scalar_lea.vmem [#allocation0], 480
    %343 = vst [vmem:[%s342] sm:%s3] %v341
    %s344 = smul.addr 2, 59
    %s345 = scalar_lea.vmem %s0, %s344
    %v346 = vld [vmem:[%s345] sm:%s3]
    %s347 = scalar_lea.vmem [#allocation0], 472
    %348 = vst [vmem:[%s347] sm:%s3] %v346
    %s349 = smul.addr 2, 58
    %s350 = scalar_lea.vmem %s0, %s349
    %v351 = vld [vmem:[%s350] sm:%s3]
    %s352 = scalar_lea.vmem [#allocation0], 464
    %353 = vst [vmem:[%s352] sm:%s3] %v351
    %s354 = smul.addr 2, 57
    %s355 = scalar_lea.vmem %s0, %s354
    %v356 = vld [vmem:[%s355] sm:%s3]
    %s357 = scalar_lea.vmem [#allocation0], 456
    %358 = vst [vmem:[%s357] sm:%s3] %v356
    %s359 = smul.addr 2, 56
    %s360 = scalar_lea.vmem %s0, %s359
    %v361 = vld [vmem:[%s360] sm:%s3]
    %s362 = scalar_lea.vmem [#allocation0], 448
    %363 = vst [vmem:[%s362] sm:%s3] %v361
    %s364 = smul.addr 2, 55
    %s365 = scalar_lea.vmem %s0, %s364
    %v366 = vld [vmem:[%s365] sm:%s3]
    %s367 = scalar_lea.vmem [#allocation0], 440
    %368 = vst [vmem:[%s367] sm:%s3] %v366
    %s369 = smul.addr 2, 54
    %s370 = scalar_lea.vmem %s0, %s369
    %v371 = vld [vmem:[%s370] sm:%s3]
    %s372 = scalar_lea.vmem [#allocation0], 432
    %373 = vst [vmem:[%s372] sm:%s3] %v371
    %s374 = smul.addr 2, 53
    %s375 = scalar_lea.vmem %s0, %s374
    %v376 = vld [vmem:[%s375] sm:%s3]
    %s377 = scalar_lea.vmem [#allocation0], 424
    %378 = vst [vmem:[%s377] sm:%s3] %v376
    %s379 = smul.addr 2, 52
    %s380 = scalar_lea.vmem %s0, %s379
    %v381 = vld [vmem:[%s380] sm:%s3]
    %s382 = scalar_lea.vmem [#allocation0], 416
    %383 = vst [vmem:[%s382] sm:%s3] %v381
    %s384 = smul.addr 2, 51
    %s385 = scalar_lea.vmem %s0, %s384
    %v386 = vld [vmem:[%s385] sm:%s3]
    %s387 = scalar_lea.vmem [#allocation0], 408
    %388 = vst [vmem:[%s387] sm:%s3] %v386
    %s389 = smul.addr 2, 50
    %s390 = scalar_lea.vmem %s0, %s389
    %v391 = vld [vmem:[%s390] sm:%s3]
    %s392 = scalar_lea.vmem [#allocation0], 400
    %393 = vst [vmem:[%s392] sm:%s3] %v391
    %s394 = smul.addr 2, 49
    %s395 = scalar_lea.vmem %s0, %s394
    %v396 = vld [vmem:[%s395] sm:%s3]
    %s397 = scalar_lea.vmem [#allocation0], 392
    %398 = vst [vmem:[%s397] sm:%s3] %v396
    %s399 = smul.addr 2, 48
    %s400 = scalar_lea.vmem %s0, %s399
    %v401 = vld [vmem:[%s400] sm:%s3]
    %s402 = scalar_lea.vmem [#allocation0], 384
    %403 = vst [vmem:[%s402] sm:%s3] %v401
    %s404 = smul.addr 2, 47
    %s405 = scalar_lea.vmem %s0, %s404
    %v406 = vld [vmem:[%s405] sm:%s3]
    %s407 = scalar_lea.vmem [#allocation0], 376
    %408 = vst [vmem:[%s407] sm:%s3] %v406
    %s409 = smul.addr 2, 46
    %s410 = scalar_lea.vmem %s0, %s409
    %v411 = vld [vmem:[%s410] sm:%s3]
    %s412 = scalar_lea.vmem [#allocation0], 368
    %413 = vst [vmem:[%s412] sm:%s3] %v411
    %s414 = smul.addr 2, 45
    %s415 = scalar_lea.vmem %s0, %s414
    %v416 = vld [vmem:[%s415] sm:%s3]
    %s417 = scalar_lea.vmem [#allocation0], 360
    %418 = vst [vmem:[%s417] sm:%s3] %v416
    %s419 = smul.addr 2, 44
    %s420 = scalar_lea.vmem %s0, %s419
    %v421 = vld [vmem:[%s420] sm:%s3]
    %s422 = scalar_lea.vmem [#allocation0], 352
    %423 = vst [vmem:[%s422] sm:%s3] %v421
    %s424 = smul.addr 2, 43
    %s425 = scalar_lea.vmem %s0, %s424
    %v426 = vld [vmem:[%s425] sm:%s3]
    %s427 = scalar_lea.vmem [#allocation0], 344
    %428 = vst [vmem:[%s427] sm:%s3] %v426
    %s429 = smul.addr 2, 42
    %s430 = scalar_lea.vmem %s0, %s429
    %v431 = vld [vmem:[%s430] sm:%s3]
    %s432 = scalar_lea.vmem [#allocation0], 336
    %433 = vst [vmem:[%s432] sm:%s3] %v431
    %s434 = smul.addr 2, 41
    %s435 = scalar_lea.vmem %s0, %s434
    %v436 = vld [vmem:[%s435] sm:%s3]
    %s437 = scalar_lea.vmem [#allocation0], 328
    %438 = vst [vmem:[%s437] sm:%s3] %v436
    %s439 = smul.addr 2, 40
    %s440 = scalar_lea.vmem %s0, %s439
    %v441 = vld [vmem:[%s440] sm:%s3]
    %s442 = scalar_lea.vmem [#allocation0], 320
    %443 = vst [vmem:[%s442] sm:%s3] %v441
    %s444 = smul.addr 2, 39
    %s445 = scalar_lea.vmem %s0, %s444
    %v446 = vld [vmem:[%s445] sm:%s3]
    %s447 = scalar_lea.vmem [#allocation0], 312
    %448 = vst [vmem:[%s447] sm:%s3] %v446
    %s449 = smul.addr 2, 38
    %s450 = scalar_lea.vmem %s0, %s449
    %v451 = vld [vmem:[%s450] sm:%s3]
    %s452 = scalar_lea.vmem [#allocation0], 304
    %453 = vst [vmem:[%s452] sm:%s3] %v451
    %s454 = smul.addr 2, 37
    %s455 = scalar_lea.vmem %s0, %s454
    %v456 = vld [vmem:[%s455] sm:%s3]
    %s457 = scalar_lea.vmem [#allocation0], 296
    %458 = vst [vmem:[%s457] sm:%s3] %v456
    %s459 = smul.addr 2, 36
    %s460 = scalar_lea.vmem %s0, %s459
    %v461 = vld [vmem:[%s460] sm:%s3]
    %s462 = scalar_lea.vmem [#allocation0], 288
    %463 = vst [vmem:[%s462] sm:%s3] %v461
    %s464 = smul.addr 2, 35
    %s465 = scalar_lea.vmem %s0, %s464
    %v466 = vld [vmem:[%s465] sm:%s3]
    %s467 = scalar_lea.vmem [#allocation0], 280
    %468 = vst [vmem:[%s467] sm:%s3] %v466
    %s469 = smul.addr 2, 34
    %s470 = scalar_lea.vmem %s0, %s469
    %v471 = vld [vmem:[%s470] sm:%s3]
    %s472 = scalar_lea.vmem [#allocation0], 272
    %473 = vst [vmem:[%s472] sm:%s3] %v471
    %s474 = smul.addr 2, 33
    %s475 = scalar_lea.vmem %s0, %s474
    %v476 = vld [vmem:[%s475] sm:%s3]
    %s477 = scalar_lea.vmem [#allocation0], 264
    %478 = vst [vmem:[%s477] sm:%s3] %v476
    %s479 = smul.addr 2, 32
    %s480 = scalar_lea.vmem %s0, %s479
    %v481 = vld [vmem:[%s480] sm:%s3]
    %s482 = scalar_lea.vmem [#allocation0], 256
    %483 = vst [vmem:[%s482] sm:%s3] %v481
    %s484 = smul.addr 2, 31
    %s485 = scalar_lea.vmem %s0, %s484
    %v486 = vld [vmem:[%s485] sm:%s3]
    %s487 = scalar_lea.vmem [#allocation0], 248
    %488 = vst [vmem:[%s487] sm:%s3] %v486
    %s489 = smul.addr 2, 30
    %s490 = scalar_lea.vmem %s0, %s489
    %v491 = vld [vmem:[%s490] sm:%s3]
    %s492 = scalar_lea.vmem [#allocation0], 240
    %493 = vst [vmem:[%s492] sm:%s3] %v491
    %s494 = smul.addr 2, 29
    %s495 = scalar_lea.vmem %s0, %s494
    %v496 = vld [vmem:[%s495] sm:%s3]
    %s497 = scalar_lea.vmem [#allocation0], 232
    %498 = vst [vmem:[%s497] sm:%s3] %v496
    %s499 = smul.addr 2, 28
    %s500 = scalar_lea.vmem %s0, %s499
    %v501 = vld [vmem:[%s500] sm:%s3]
    %s502 = scalar_lea.vmem [#allocation0], 224
    %503 = vst [vmem:[%s502] sm:%s3] %v501
    %s504 = smul.addr 2, 27
    %s505 = scalar_lea.vmem %s0, %s504
    %v506 = vld [vmem:[%s505] sm:%s3]
    %s507 = scalar_lea.vmem [#allocation0], 216
    %508 = vst [vmem:[%s507] sm:%s3] %v506
    %s509 = smul.addr 2, 26
    %s510 = scalar_lea.vmem %s0, %s509
    %v511 = vld [vmem:[%s510] sm:%s3]
    %s512 = scalar_lea.vmem [#allocation0], 208
    %513 = vst [vmem:[%s512] sm:%s3] %v511
    %s514 = smul.addr 2, 25
    %s515 = scalar_lea.vmem %s0, %s514
    %v516 = vld [vmem:[%s515] sm:%s3]
    %s517 = scalar_lea.vmem [#allocation0], 200
    %518 = vst [vmem:[%s517] sm:%s3] %v516
    %s519 = smul.addr 2, 24
    %s520 = scalar_lea.vmem %s0, %s519
    %v521 = vld [vmem:[%s520] sm:%s3]
    %s522 = scalar_lea.vmem [#allocation0], 192
    %523 = vst [vmem:[%s522] sm:%s3] %v521
    %s524 = smul.addr 2, 23
    %s525 = scalar_lea.vmem %s0, %s524
    %v526 = vld [vmem:[%s525] sm:%s3]
    %s527 = scalar_lea.vmem [#allocation0], 184
    %528 = vst [vmem:[%s527] sm:%s3] %v526
    %s529 = smul.addr 2, 22
    %s530 = scalar_lea.vmem %s0, %s529
    %v531 = vld [vmem:[%s530] sm:%s3]
    %s532 = scalar_lea.vmem [#allocation0], 176
    %533 = vst [vmem:[%s532] sm:%s3] %v531
    %s534 = smul.addr 2, 21
    %s535 = scalar_lea.vmem %s0, %s534
    %v536 = vld [vmem:[%s535] sm:%s3]
    %s537 = scalar_lea.vmem [#allocation0], 168
    %538 = vst [vmem:[%s537] sm:%s3] %v536
    %s539 = smul.addr 2, 20
    %s540 = scalar_lea.vmem %s0, %s539
    %v541 = vld [vmem:[%s540] sm:%s3]
    %s542 = scalar_lea.vmem [#allocation0], 160
    %543 = vst [vmem:[%s542] sm:%s3] %v541
    %s544 = smul.addr 2, 19
    %s545 = scalar_lea.vmem %s0, %s544
    %v546 = vld [vmem:[%s545] sm:%s3]
    %s547 = scalar_lea.vmem [#allocation0], 152
    %548 = vst [vmem:[%s547] sm:%s3] %v546
    %s549 = smul.addr 2, 18
    %s550 = scalar_lea.vmem %s0, %s549
    %v551 = vld [vmem:[%s550] sm:%s3]
    %s552 = scalar_lea.vmem [#allocation0], 144
    %553 = vst [vmem:[%s552] sm:%s3] %v551
    %s554 = smul.addr 2, 17
    %s555 = scalar_lea.vmem %s0, %s554
    %v556 = vld [vmem:[%s555] sm:%s3]
    %s557 = scalar_lea.vmem [#allocation0], 136
    %558 = vst [vmem:[%s557] sm:%s3] %v556
    %s559 = smul.addr 2, 16
    %s560 = scalar_lea.vmem %s0, %s559
    %v561 = vld [vmem:[%s560] sm:%s3]
    %s562 = scalar_lea.vmem [#allocation0], 128
    %563 = vst [vmem:[%s562] sm:%s3] %v561
    %s564 = smul.addr 2, 15
    %s565 = scalar_lea.vmem %s0, %s564
    %v566 = vld [vmem:[%s565] sm:%s3]
    %s567 = scalar_lea.vmem [#allocation0], 120
    %568 = vst [vmem:[%s567] sm:%s3] %v566
    %s569 = smul.addr 2, 14
    %s570 = scalar_lea.vmem %s0, %s569
    %v571 = vld [vmem:[%s570] sm:%s3]
    %s572 = scalar_lea.vmem [#allocation0], 112
    %573 = vst [vmem:[%s572] sm:%s3] %v571
    %s574 = smul.addr 2, 13
    %s575 = scalar_lea.vmem %s0, %s574
    %v576 = vld [vmem:[%s575] sm:%s3]
    %s577 = scalar_lea.vmem [#allocation0], 104
    %578 = vst [vmem:[%s577] sm:%s3] %v576
    %s579 = smul.addr 2, 12
    %s580 = scalar_lea.vmem %s0, %s579
    %v581 = vld [vmem:[%s580] sm:%s3]
    %s582 = scalar_lea.vmem [#allocation0], 96
    %583 = vst [vmem:[%s582] sm:%s3] %v581
    %s584 = smul.addr 2, 11
    %s585 = scalar_lea.vmem %s0, %s584
    %v586 = vld [vmem:[%s585] sm:%s3]
    %s587 = scalar_lea.vmem [#allocation0], 88
    %588 = vst [vmem:[%s587] sm:%s3] %v586
    %s589 = smul.addr 2, 10
    %s590 = scalar_lea.vmem %s0, %s589
    %v591 = vld [vmem:[%s590] sm:%s3]
    %s592 = scalar_lea.vmem [#allocation0], 80
    %593 = vst [vmem:[%s592] sm:%s3] %v591
    %s594 = smul.addr 2, 9
    %s595 = scalar_lea.vmem %s0, %s594
    %v596 = vld [vmem:[%s595] sm:%s3]
    %s597 = scalar_lea.vmem [#allocation0], 72
    %598 = vst [vmem:[%s597] sm:%s3] %v596
    %s599 = smul.addr 2, 8
    %s600 = scalar_lea.vmem %s0, %s599
    %v601 = vld [vmem:[%s600] sm:%s3]
    %s602 = scalar_lea.vmem [#allocation0], 64
    %603 = vst [vmem:[%s602] sm:%s3] %v601
    %s604 = smul.addr 2, 7
    %s605 = scalar_lea.vmem %s0, %s604
    %v606 = vld [vmem:[%s605] sm:%s3]
    %s607 = scalar_lea.vmem [#allocation0], 56
    %608 = vst [vmem:[%s607] sm:%s3] %v606
    %s609 = smul.addr 2, 6
    %s610 = scalar_lea.vmem %s0, %s609
    %v611 = vld [vmem:[%s610] sm:%s3]
    %s612 = scalar_lea.vmem [#allocation0], 48
    %613 = vst [vmem:[%s612] sm:%s3] %v611
    %s614 = smul.addr 2, 5
    %s615 = scalar_lea.vmem %s0, %s614
    %v616 = vld [vmem:[%s615] sm:%s3]
    %s617 = scalar_lea.vmem [#allocation0], 40
    %618 = vst [vmem:[%s617] sm:%s3] %v616
    %s619 = smul.addr 2, 4
    %s620 = scalar_lea.vmem %s0, %s619
    %v621 = vld [vmem:[%s620] sm:%s3]
    %s622 = scalar_lea.vmem [#allocation0], 32
    %623 = vst [vmem:[%s622] sm:%s3] %v621
    %s624 = smul.addr 2, 3
    %s625 = scalar_lea.vmem %s0, %s624
    %v626 = vld [vmem:[%s625] sm:%s3]
    %s627 = scalar_lea.vmem [#allocation0], 24
    %628 = vst [vmem:[%s627] sm:%s3] %v626
    %s629 = smul.addr 2, 2
    %s630 = scalar_lea.vmem %s0, %s629
    %v631 = vld [vmem:[%s630] sm:%s3]
    %s632 = scalar_lea.vmem [#allocation0], 16
    %633 = vst [vmem:[%s632] sm:%s3] %v631
    %s634 = scalar_lea.vmem %s0, 2
    %v635 = vld [vmem:[%s634] sm:%s3]
    %s636 = scalar_lea.vmem [#allocation0], 8
    %637 = vst [vmem:[%s636] sm:%s3] %v635
    %v638 = vld [vmem:[%s0] sm:%s3]
    %639 = vst [vmem:[#allocation0] sm:%s3] %v638
    %v640 = vld [vmem:[#allocation0] ss:$8 sm:$0xf]
    %v641 = vld [vmem:[#allocation0] ss:$8 sm:$0xf0]
    %vm642 = vcmask 1047556
    %v643 = vsel %vm642, %v641, %v640
    %vm644 = vcmask 220160
    %645 = vst.msk [vmem:[%s1] sm:$0xff] %vm644, %v643
    %s646 = scalar_lea.vmem [#allocation0], 64
    %v647 = vld [vmem:[%s646] ss:$8 sm:$0xf]
    %s648 = scalar_lea.vmem [#allocation0], 64
    %v649 = vld [vmem:[%s648] ss:$8 sm:$0xf0]
    %vm650 = vcmask 1047556
    %v651 = vsel %vm650, %v649, %v647
    %vm652 = vcmask 220160
    %s653 = scalar_lea.vmem %s1, 8
    %654 = vst.msk [vmem:[%s653] sm:$0xff] %vm652, %v651
    %s655 = scalar_lea.vmem [#allocation0], 128
    %v656 = vld [vmem:[%s655] ss:$8 sm:$0xf]
    %s657 = scalar_lea.vmem [#allocation0], 128
    %v658 = vld [vmem:[%s657] ss:$8 sm:$0xf0]
    %vm659 = vcmask 1047556
    %v660 = vsel %vm659, %v658, %v656
    %vm661 = vcmask 220160
    %s662 = scalar_lea.vmem %s1, 16
    %663 = vst.msk [vmem:[%s662] sm:$0xff] %vm661, %v660
    %s664 = scalar_lea.vmem [#allocation0], 192
    %v665 = vld [vmem:[%s664] ss:$8 sm:$0xf]
    %s666 = scalar_lea.vmem [#allocation0], 192
    %v667 = vld [vmem:[%s666] ss:$8 sm:$0xf0]
    %vm668 = vcmask 1047556
    %v669 = vsel %vm668, %v667, %v665
    %vm670 = vcmask 220160
    %s671 = scalar_lea.vmem %s1, 24
    %672 = vst.msk [vmem:[%s671] sm:$0xff] %vm670, %v669
    %s673 = scalar_lea.vmem [#allocation0], 256
    %v674 = vld [vmem:[%s673] ss:$8 sm:$0xf]
    %s675 = scalar_lea.vmem [#allocation0], 256
    %v676 = vld [vmem:[%s675] ss:$8 sm:$0xf0]
    %vm677 = vcmask 1047556
    %v678 = vsel %vm677, %v676, %v674
    %vm679 = vcmask 220160
    %s680 = scalar_lea.vmem %s1, 32
    %681 = vst.msk [vmem:[%s680] sm:$0xff] %vm679, %v678
    %s682 = scalar_lea.vmem [#allocation0], 320
    %v683 = vld [vmem:[%s682] ss:$8 sm:$0xf]
    %s684 = scalar_lea.vmem [#allocation0], 320
    %v685 = vld [vmem:[%s684] ss:$8 sm:$0xf0]
    %vm686 = vcmask 1047556
    %v687 = vsel %vm686, %v685, %v683
    %vm688 = vcmask 220160
    %s689 = scalar_lea.vmem %s1, 40
    %690 = vst.msk [vmem:[%s689] sm:$0xff] %vm688, %v687
    %s691 = scalar_lea.vmem [#allocation0], 384
    %v692 = vld [vmem:[%s691] ss:$8 sm:$0xf]
    %s693 = scalar_lea.vmem [#allocation0], 384
    %v694 = vld [vmem:[%s693] ss:$8 sm:$0xf0]
    %vm695 = vcmask 1047556
    %v696 = vsel %vm695, %v694, %v692
    %vm697 = vcmask 220160
    %s698 = scalar_lea.vmem %s1, 48
    %699 = vst.msk [vmem:[%s698] sm:$0xff] %vm697, %v696
    %s700 = scalar_lea.vmem [#allocation0], 448
    %v701 = vld [vmem:[%s700] ss:$8 sm:$0xf]
    %s702 = scalar_lea.vmem [#allocation0], 448
    %v703 = vld [vmem:[%s702] ss:$8 sm:$0xf0]
    %vm704 = vcmask 1047556
    %v705 = vsel %vm704, %v703, %v701
    %vm706 = vcmask 220160
    %s707 = scalar_lea.vmem %s1, 56
    %708 = vst.msk [vmem:[%s707] sm:$0xff] %vm706, %v705
    %s709 = scalar_lea.vmem [#allocation0], 512
    %v710 = vld [vmem:[%s709] ss:$8 sm:$0xf]
    %s711 = scalar_lea.vmem [#allocation0], 512
    %v712 = vld [vmem:[%s711] ss:$8 sm:$0xf0]
    %vm713 = vcmask 1047556
    %v714 = vsel %vm713, %v712, %v710
    %vm715 = vcmask 220160
    %s716 = scalar_lea.vmem %s1, 64
    %717 = vst.msk [vmem:[%s716] sm:$0xff] %vm715, %v714
    %s718 = scalar_lea.vmem [#allocation0], 576
    %v719 = vld [vmem:[%s718] ss:$8 sm:$0xf]
    %s720 = scalar_lea.vmem [#allocation0], 576
    %v721 = vld [vmem:[%s720] ss:$8 sm:$0xf0]
    %vm722 = vcmask 1047556
    %v723 = vsel %vm722, %v721, %v719
    %vm724 = vcmask 220160
    %s725 = scalar_lea.vmem %s1, 72
    %726 = vst.msk [vmem:[%s725] sm:$0xff] %vm724, %v723
    %s727 = scalar_lea.vmem [#allocation0], 640
    %v728 = vld [vmem:[%s727] ss:$8 sm:$0xf]
    %s729 = scalar_lea.vmem [#allocation0], 640
    %v730 = vld [vmem:[%s729] ss:$8 sm:$0xf0]
    %vm731 = vcmask 1047556
    %v732 = vsel %vm731, %v730, %v728
    %vm733 = vcmask 220160
    %s734 = scalar_lea.vmem %s1, 80
    %735 = vst.msk [vmem:[%s734] sm:$0xff] %vm733, %v732
    %s736 = scalar_lea.vmem [#allocation0], 704
    %v737 = vld [vmem:[%s736] ss:$8 sm:$0xf]
    %s738 = scalar_lea.vmem [#allocation0], 704
    %v739 = vld [vmem:[%s738] ss:$8 sm:$0xf0]
    %vm740 = vcmask 1047556
    %v741 = vsel %vm740, %v739, %v737
    %vm742 = vcmask 220160
    %s743 = scalar_lea.vmem %s1, 88
    %744 = vst.msk [vmem:[%s743] sm:$0xff] %vm742, %v741
    %s745 = scalar_lea.vmem [#allocation0], 768
    %v746 = vld [vmem:[%s745] ss:$8 sm:$0xf]
    %s747 = scalar_lea.vmem [#allocation0], 768
    %v748 = vld [vmem:[%s747] ss:$8 sm:$0xf0]
    %vm749 = vcmask 1047556
    %v750 = vsel %vm749, %v748, %v746
    %vm751 = vcmask 220160
    %s752 = scalar_lea.vmem %s1, 96
    %753 = vst.msk [vmem:[%s752] sm:$0xff] %vm751, %v750
    %s754 = scalar_lea.vmem [#allocation0], 832
    %v755 = vld [vmem:[%s754] ss:$8 sm:$0xf]
    %s756 = scalar_lea.vmem [#allocation0], 832
    %v757 = vld [vmem:[%s756] ss:$8 sm:$0xf0]
    %vm758 = vcmask 1047556
    %v759 = vsel %vm758, %v757, %v755
    %vm760 = vcmask 220160
    %s761 = scalar_lea.vmem %s1, 104
    %762 = vst.msk [vmem:[%s761] sm:$0xff] %vm760, %v759
    %s763 = scalar_lea.vmem [#allocation0], 896
    %v764 = vld [vmem:[%s763] ss:$8 sm:$0xf]
    %s765 = scalar_lea.vmem [#allocation0], 896
    %v766 = vld [vmem:[%s765] ss:$8 sm:$0xf0]
    %vm767 = vcmask 1047556
    %v768 = vsel %vm767, %v766, %v764
    %vm769 = vcmask 220160
    %s770 = scalar_lea.vmem %s1, 112
    %771 = vst.msk [vmem:[%s770] sm:$0xff] %vm769, %v768
    %s772 = scalar_lea.vmem [#allocation0], 960
    %v773 = vld [vmem:[%s772] ss:$8 sm:$0xf]
    %s774 = scalar_lea.vmem [#allocation0], 960
    %v775 = vld [vmem:[%s774] ss:$8 sm:$0xf0]
    %vm776 = vcmask 1047556
    %v777 = vsel %vm776, %v775, %v773
    %vm778 = vcmask 220160
    %s779 = scalar_lea.vmem %s1, 120
    %780 = vst.msk [vmem:[%s779] sm:$0xff] %vm778, %v777
    %s781 = scalar_lea.vmem [#allocation0], 1
    %v782 = vld [vmem:[%s781] ss:$8 sm:$0xf]
    %s783 = scalar_lea.vmem [#allocation0], 1
    %v784 = vld [vmem:[%s783] ss:$8 sm:$0xf0]
    %vm785 = vcmask 1047556
    %v786 = vsel %vm785, %v784, %v782
    %787 = vrot.lane.b32.xlu0 %v786, 27
    %v788 = vpop.permute.xlu0 %787
    %vm789 = vcmask 441560
    %790 = vst.msk [vmem:[%s1] sm:$0xff] %vm789, %v788
    %s791 = scalar_lea.vmem [#allocation0], 257
    %v792 = vld [vmem:[%s791] ss:$8 sm:$0xf]
    %s793 = scalar_lea.vmem [#allocation0], 257
    %v794 = vld [vmem:[%s793] ss:$8 sm:$0xf0]
    %vm795 = vcmask 1047556
    %v796 = vsel %vm795, %v794, %v792
    %797 = vrot.lane.b32.xlu0 %v796, 27
    %v798 = vpop.permute.xlu0 %797
    %vm799 = vcmask 441560
    %s800 = scalar_lea.vmem %s1, 32
    %801 = vst.msk [vmem:[%s800] sm:$0xff] %vm799, %v798
    %s802 = scalar_lea.vmem [#allocation0], 513
    %v803 = vld [vmem:[%s802] ss:$8 sm:$0xf]
    %s804 = scalar_lea.vmem [#allocation0], 513
    %v805 = vld [vmem:[%s804] ss:$8 sm:$0xf0]
    %vm806 = vcmask 1047556
    %v807 = vsel %vm806, %v805, %v803
    %808 = vrot.lane.b32.xlu0 %v807, 27
    %v809 = vpop.permute.xlu0 %808
    %vm810 = vcmask 441560
    %s811 = scalar_lea.vmem %s1, 64
    %812 = vst.msk [vmem:[%s811] sm:$0xff] %vm810, %v809
    %s813 = scalar_lea.vmem [#allocation0], 769
    %v814 = vld [vmem:[%s813] ss:$8 sm:$0xf]
    %s815 = scalar_lea.vmem [#allocation0], 769
    %v816 = vld [vmem:[%s815] ss:$8 sm:$0xf0]
    %vm817 = vcmask 1047556
    %v818 = vsel %vm817, %v816, %v814
    %819 = vrot.lane.b32.xlu0 %v818, 27
    %v820 = vpop.permute.xlu0 %819
    %vm821 = vcmask 441560
    %s822 = scalar_lea.vmem %s1, 96
    %823 = vst.msk [vmem:[%s822] sm:$0xff] %vm821, %v820
    %s824 = scalar_lea.vmem [#allocation0], 65
    %v825 = vld [vmem:[%s824] ss:$8 sm:$0xf]
    %s826 = scalar_lea.vmem [#allocation0], 65
    %v827 = vld [vmem:[%s826] ss:$8 sm:$0xf0]
    %vm828 = vcmask 1047556
    %v829 = vsel %vm828, %v827, %v825
    %830 = vrot.lane.b32.xlu0 %v829, 27
    %v831 = vpop.permute.xlu0 %830
    %vm832 = vcmask 441560
    %s833 = scalar_lea.vmem %s1, 8
    %834 = vst.msk [vmem:[%s833] sm:$0xff] %vm832, %v831
    %s835 = scalar_lea.vmem [#allocation0], 321
    %v836 = vld [vmem:[%s835] ss:$8 sm:$0xf]
    %s837 = scalar_lea.vmem [#allocation0], 321
    %v838 = vld [vmem:[%s837] ss:$8 sm:$0xf0]
    %vm839 = vcmask 1047556
    %v840 = vsel %vm839, %v838, %v836
    %841 = vrot.lane.b32.xlu0 %v840, 27
    %v842 = vpop.permute.xlu0 %841
    %vm843 = vcmask 441560
    %s844 = scalar_lea.vmem %s1, 40
    %845 = vst.msk [vmem:[%s844] sm:$0xff] %vm843, %v842
    %s846 = scalar_lea.vmem [#allocation0], 577
    %v847 = vld [vmem:[%s846] ss:$8 sm:$0xf]
    %s848 = scalar_lea.vmem [#allocation0], 577
    %v849 = vld [vmem:[%s848] ss:$8 sm:$0xf0]
    %vm850 = vcmask 1047556
    %v851 = vsel %vm850, %v849, %v847
    %852 = vrot.lane.b32.xlu0 %v851, 27
    %v853 = vpop.permute.xlu0 %852
    %vm854 = vcmask 441560
    %s855 = scalar_lea.vmem %s1, 72
    %856 = vst.msk [vmem:[%s855] sm:$0xff] %vm854, %v853
    %s857 = scalar_lea.vmem [#allocation0], 833
    %v858 = vld [vmem:[%s857] ss:$8 sm:$0xf]
    %s859 = scalar_lea.vmem [#allocation0], 833
    %v860 = vld [vmem:[%s859] ss:$8 sm:$0xf0]
    %vm861 = vcmask 1047556
    %v862 = vsel %vm861, %v860, %v858
    %863 = vrot.lane.b32.xlu0 %v862, 27
    %v864 = vpop.permute.xlu0 %863
    %vm865 = vcmask 441560
    %s866 = scalar_lea.vmem %s1, 104
    %867 = vst.msk [vmem:[%s866] sm:$0xff] %vm865, %v864
    %s868 = scalar_lea.vmem [#allocation0], 129
    %v869 = vld [vmem:[%s868] ss:$8 sm:$0xf]
    %s870 = scalar_lea.vmem [#allocation0], 129
    %v871 = vld [vmem:[%s870] ss:$8 sm:$0xf0]
    %vm872 = vcmask 1047556
    %v873 = vsel %vm872, %v871, %v869
    %874 = vrot.lane.b32.xlu0 %v873, 27
    %v875 = vpop.permute.xlu0 %874
    %vm876 = vcmask 441560
    %s877 = scalar_lea.vmem %s1, 16
    %878 = vst.msk [vmem:[%s877] sm:$0xff] %vm876, %v875
    %s879 = scalar_lea.vmem [#allocation0], 385
    %v880 = vld [vmem:[%s879] ss:$8 sm:$0xf]
    %s881 = scalar_lea.vmem [#allocation0], 385
    %v882 = vld [vmem:[%s881] ss:$8 sm:$0xf0]
    %vm883 = vcmask 1047556
    %v884 = vsel %vm883, %v882, %v880
    %885 = vrot.lane.b32.xlu0 %v884, 27
    %v886 = vpop.permute.xlu0 %885
    %vm887 = vcmask 441560
    %s888 = scalar_lea.vmem %s1, 48
    %889 = vst.msk [vmem:[%s888] sm:$0xff] %vm887, %v886
    %s890 = scalar_lea.vmem [#allocation0], 641
    %v891 = vld [vmem:[%s890] ss:$8 sm:$0xf]
    %s892 = scalar_lea.vmem [#allocation0], 641
    %v893 = vld [vmem:[%s892] ss:$8 sm:$0xf0]
    %vm894 = vcmask 1047556
    %v895 = vsel %vm894, %v893, %v891
    %896 = vrot.lane.b32.xlu0 %v895, 27
    %v897 = vpop.permute.xlu0 %896
    %vm898 = vcmask 441560
    %s899 = scalar_lea.vmem %s1, 80
    %900 = vst.msk [vmem:[%s899] sm:$0xff] %vm898, %v897
    %s901 = scalar_lea.vmem [#allocation0], 897
    %v902 = vld [vmem:[%s901] ss:$8 sm:$0xf]
    %s903 = scalar_lea.vmem [#allocation0], 897
    %v904 = vld [vmem:[%s903] ss:$8 sm:$0xf0]
    %vm905 = vcmask 1047556
    %v906 = vsel %vm905, %v904, %v902
    %907 = vrot.lane.b32.xlu0 %v906, 27
    %v908 = vpop.permute.xlu0 %907
    %vm909 = vcmask 441560
    %s910 = scalar_lea.vmem %s1, 112
    %911 = vst.msk [vmem:[%s910] sm:$0xff] %vm909, %v908
    %s912 = scalar_lea.vmem [#allocation0], 193
    %v913 = vld [vmem:[%s912] ss:$8 sm:$0xf]
    %s914 = scalar_lea.vmem [#allocation0], 193
    %v915 = vld [vmem:[%s914] ss:$8 sm:$0xf0]
    %vm916 = vcmask 1047556
    %v917 = vsel %vm916, %v915, %v913
    %918 = vrot.lane.b32.xlu0 %v917, 27
    %v919 = vpop.permute.xlu0 %918
    %vm920 = vcmask 441560
    %s921 = scalar_lea.vmem %s1, 24
    %922 = vst.msk [vmem:[%s921] sm:$0xff] %vm920, %v919
    %s923 = scalar_lea.vmem [#allocation0], 449
    %v924 = vld [vmem:[%s923] ss:$8 sm:$0xf]
    %s925 = scalar_lea.vmem [#allocation0], 449
    %v926 = vld [vmem:[%s925] ss:$8 sm:$0xf0]
    %vm927 = vcmask 1047556
    %v928 = vsel %vm927, %v926, %v924
    %929 = vrot.lane.b32.xlu0 %v928, 27
    %v930 = vpop.permute.xlu0 %929
    %vm931 = vcmask 441560
    %s932 = scalar_lea.vmem %s1, 56
    %933 = vst.msk [vmem:[%s932] sm:$0xff] %vm931, %v930
    %s934 = scalar_lea.vmem [#allocation0], 705
    %v935 = vld [vmem:[%s934] ss:$8 sm:$0xf]
    %s936 = scalar_lea.vmem [#allocation0], 705
    %v937 = vld [vmem:[%s936] ss:$8 sm:$0xf0]
    %vm938 = vcmask 1047556
    %v939 = vsel %vm938, %v937, %v935
    %940 = vrot.lane.b32.xlu0 %v939, 27
    %v941 = vpop.permute.xlu0 %940
    %vm942 = vcmask 441560
    %s943 = scalar_lea.vmem %s1, 88
    %944 = vst.msk [vmem:[%s943] sm:$0xff] %vm942, %v941
    %s945 = scalar_lea.vmem [#allocation0], 961
    %v946 = vld [vmem:[%s945] ss:$8 sm:$0xf]
    %s947 = scalar_lea.vmem [#allocation0], 961
    %v948 = vld [vmem:[%s947] ss:$8 sm:$0xf0]
    %vm949 = vcmask 1047556
    %v950 = vsel %vm949, %v948, %v946
    %951 = vrot.lane.b32.xlu0 %v950, 27
    %v952 = vpop.permute.xlu0 %951
    %vm953 = vcmask 441560
    %s954 = scalar_lea.vmem %s1, 120
    %955 = vst.msk [vmem:[%s954] sm:$0xff] %vm953, %v952

// kernel: run.1
$region0: #{run.1}
  #allocation0 [shape = 'u32[]', space=smem, size = 0x4, offset = 0x4, fixed_abs, tag = 'smem constant byte address 0x4 - core index']
  #allocation1 [shape = 'u32[144,128]{1,0:T(1,128)}', space=vmem, size = 0x12000, scoped, tag = 'internal scratch']
  %s0 = inlined_call_operand.vmem [shape: f32[8,27,54], index: 0, kind: input, shape index: {}]
  %s1 = inlined_call_operand.vmem [shape: f32[4,27], index: 1, kind: input, shape index: {}]
  %s2 = inlined_call_operand.vmem [shape: f32[4,1], index: 2, kind: input, shape index: {}]
  %s3 = inlined_call_operand.vmem [shape: f32[4,32,54], index: 3, kind: input, shape index: {}]
  %s4 = inlined_call_operand.vmem [shape: f32[1,32], index: 4, kind: input, shape index: {}]
  %s5 = inlined_call_operand.vmem [shape: f32[32,32], index: 5, kind: input, shape index: {}]
  %s6 = inlined_call_operand.vmem [shape: f32[1,32], index: 6, kind: input, shape index: {}]
  %s7 = inlined_call_operand.vmem [shape: s32[8,1,54], index: 7, kind: input, shape index: {}]
  %s8 = inlined_call_operand.vmem [shape: f32[2,54], index: 8, kind: input, shape index: {}]
  %s9 = inlined_call_operand.vmem [shape: f32[2,32], index: 9, kind: output, shape index: {0}]
  %s10 = inlined_call_operand.vmem [shape: s32[4,54], index: 10, kind: output, shape index: {1}]
  %11 = xla_tuple %s9, %s10
  %s12 = sld [smem:[#allocation0]]
  $region54: #{run.1} parent=0
    _
  %s14 = ssub.s32 1, %s12
  %s15 = scalar_select 0, %s14, %s12
  // Predicated region
  $region2: #{run.1} parent=0 // pred_check
    _
  $region3: #{run.1} parent=0 // pred_check_branch
    %17 = sbr.rel (0) target = $region5
  $region4: #{run.1} parent=0 // pred_region
    _
  $region5: #{run.1} parent=0 // pred_fallthru
    _
  // Predicated region
  $region6: #{run.1} parent=0 // pred_check
    _
  $region7: #{run.1} parent=0 // pred_check_branch
    %19 = sbr.rel (0) target = $region9
  $region8: #{run.1} parent=0 // pred_region
    _
  $region9: #{run.1} parent=0 // pred_fallthru
    _
  // Predicated region
  $region10: #{run.1} parent=0 // pred_check
    _
  $region11: #{run.1} parent=0 // pred_check_branch
    %21 = sbr.rel (0) target = $region13
  $region12: #{run.1} parent=0 // pred_region
    _
  $region13: #{run.1} parent=0 // pred_fallthru
    _
  // Predicated region
  $region14: #{run.1} parent=0 // pred_check
    _
  $region15: #{run.1} parent=0 // pred_check_branch
    %23 = sbr.rel (0) target = $region17
  $region16: #{run.1} parent=0 // pred_region
    _
  $region17: #{run.1} parent=0 // pred_fallthru
    _
  // Predicated region
  $region18: #{run.1} parent=0 // pred_check
    _
  $region19: #{run.1} parent=0 // pred_check_branch
    %25 = sbr.rel (0) target = $region21
  $region20: #{run.1} parent=0 // pred_region
    _
  $region21: #{run.1} parent=0 // pred_fallthru
    _
  // Predicated region
  $region22: #{run.1} parent=0 // pred_check
    _
  $region23: #{run.1} parent=0 // pred_check_branch
    %27 = sbr.rel (0) target = $region25
  $region24: #{run.1} parent=0 // pred_region
    _
  $region25: #{run.1} parent=0 // pred_fallthru
    _
  // Predicated region
  $region26: #{run.1} parent=0 // pred_check
    _
  $region27: #{run.1} parent=0 // pred_check_branch
    %29 = sbr.rel (0) target = $region29
  $region28: #{run.1} parent=0 // pred_region
    _
  $region29: #{run.1} parent=0 // pred_fallthru
    _
  // Predicated region
  $region30: #{run.1} parent=0 // pred_check
    _
  $region31: #{run.1} parent=0 // pred_check_branch
    %31 = sbr.rel (0) target = $region33
  $region32: #{run.1} parent=0 // pred_region
    _
  $region33: #{run.1} parent=0 // pred_fallthru
    _
  // Predicated region
  $region34: #{run.1} parent=0 // pred_check
    _
  $region35: #{run.1} parent=0 // pred_check_branch
    %33 = sbr.rel (0) target = $region37
  $region36: #{run.1} parent=0 // pred_region
    _
  $region37: #{run.1} parent=0 // pred_fallthru
    _
  %v34 = vld [vmem:[%s1] sm:$0xf]
  %v35 = vld [vmem:[%s2] sm:$0xf]
  %37 = vset.pattern.permute.xlu0 0
  %38 = vperm.xlu0 %37, %v35
  %v39 = vpop.permute.xlu0 %38
  %v41 = vld [vmem:[%s0] sm:$0xff]
  %v42 = vld [vmem:[%s0 + $0x8] sm:$0xff]
  %v43 = vld [vmem:[%s0 + $0x10] sm:$0xff]
  %v44 = vld [vmem:[%s0 + $0x18] sm:$0x7]
  %vm45 = vcmask 220160
  %v47 = vsel %vm45, %v34, 0
  %vm49 = vcmask 1042432
  %v51 = vsel %vm49, %v44, 0
  %53 = vmatprep.subr.mxu0 0.0
  %54 = vmatpush1.msra.mxu0 %v41
  %55 = vmatprep.subr.mxu0 0.0
  %56 = vmatpush1.msra.mxu0 %v42
  %57 = vmatprep.subr.mxu0 0.0
  %58 = vmatpush1.msra.mxu0 %v43
  %59 = vmatprep.subr.mxu0 0.0
  %60 = vmatpush1.msra.mxu0 %v51
  %61 = vmatprep.subr.mxu0 0.0
  %62 = vmatpush1.msra.mxu0 0.0
  %63 = vmatprep.subr.mxu0 0.0
  %64 = vmatpush1.msra.mxu0 0.0
  %65 = vmatprep.subr.mxu0 0.0
  %66 = vmatpush1.msra.mxu0 0.0
  %67 = vmatprep.subr.mxu0 0.0
  %68 = vmatpush1.msra.mxu0 0.0
  %69 = vmatprep.subr.mxu0 0.0
  %70 = vmatpush1.msra.mxu0 0.0
  %71 = vmatprep.subr.mxu0 0.0
  %72 = vmatpush1.msra.mxu0 0.0
  %73 = vmatprep.subr.mxu0 0.0
  %74 = vmatpush1.msra.mxu0 0.0
  %75 = vmatprep.subr.mxu0 0.0
  %76 = vmatpush1.msra.mxu0 0.0
  %77 = vmatprep.subr.mxu0 0.0
  %78 = vmatpush1.msra.mxu0 0.0
  %79 = vmatprep.subr.mxu0 0.0
  %80 = vmatpush1.msra.mxu0 0.0
  %81 = vmatprep.subr.mxu0 0.0
  %82 = vmatpush1.msra.mxu0 0.0
  %83 = vmatprep.subr.mxu0 0.0
  %84 = vmatpush1.msra.mxu0 0.0
  %85 = vmatprep.subr.mxu0 0.0
  %86 = vmatpush1.msra.mxu0 0.0
  %87 = vmatprep.subr.mxu0 0.0
  %88 = vmatpush1.msra.mxu0 0.0
  %89 = vmatprep.subr.mxu0 0.0
  %90 = vmatpush1.msra.mxu0 0.0
  %91 = vmatprep.subr.mxu0 0.0
  %92 = vmatpush1.msra.mxu0 0.0
  %93 = vmatprep.subr.mxu0 0.0
  %94 = vmatpush1.msra.mxu0 0.0
  %95 = vmatprep.subr.mxu0 0.0
  %96 = vmatpush1.msra.mxu0 0.0
  %97 = vmatprep.subr.mxu0 0.0
  %98 = vmatpush1.msra.mxu0 0.0
  %99 = vmatprep.subr.mxu0 0.0
  %100 = vmatpush1.msra.mxu0 0.0
  %101 = vmatprep.subr.mxu0 0.0
  %102 = vmatpush1.msra.mxu0 0.0
  %103 = vmatprep.subr.mxu0 0.0
  %104 = vmatpush1.msra.mxu0 0.0
  %105 = vmatprep.subr.mxu0 0.0
  %106 = vmatpush1.msra.mxu0 0.0
  %107 = vmatprep.subr.mxu0 0.0
  %108 = vmatpush1.msra.mxu0 0.0
  %109 = vmatprep.subr.mxu0 0.0
  %110 = vmatpush1.msra.mxu0 0.0
  %111 = vmatprep.subr.mxu0 0.0
  %112 = vmatpush1.msra.mxu0 0.0
  %113 = vmatprep.subr.mxu0 0.0
  %114 = vmatpush1.msra.mxu0 0.0
  %115 = vmatprep.subr.mxu0 0.0
  %116 = vmatpush1.msra.mxu0 0.0
  %117 = vmatprep.mubr.f32.mxu0 0.0
  %118 = vmatmul.mubr.f32.gmra.mrb[0].mxu0 %v47
  %v119 = vpop.f32.mrb[0].mxu0
  %v120 = vadd.f32 %v39, %v119
  %v121 = vpop.f32.mrb[0].mxu0
  %122 = vdwg.mxu0
  %v123 = vmax.f32 %v120, 0.0
  %v124 = vld [vmem:[%s7] sm:$0x1]
  %v125 = vlaneseq
  %v126 = vshrl.u32 %v125, 7
  %v127 = vsub.s32 0, %v126
  %v128 = vrot.slane %v124, %v127
  %s129 = scalar_lea.vmem %s0, 32
  %v130 = vld [vmem:[%s129] sm:$0xff]
  %v131 = vld [vmem:[%s129 + $0x8] sm:$0xff]
  %v132 = vld [vmem:[%s129 + $0x10] sm:$0xff]
  %v133 = vld [vmem:[%s129 + $0x18] sm:$0x7]
  %v135 = vsel %vm49, %v133, 0
  %137 = vmatprep.subr.mxu0 0.0
  %138 = vmatpush1.msra.mxu0 %v130
  %139 = vmatprep.subr.mxu0 0.0
  %140 = vmatpush1.msra.mxu0 %v131
  %141 = vmatprep.subr.mxu0 0.0
  %142 = vmatpush1.msra.mxu0 %v132
  %143 = vmatprep.subr.mxu0 0.0
  %144 = vmatpush1.msra.mxu0 %v135
  %145 = vmatprep.subr.mxu0 0.0
  %146 = vmatpush1.msra.mxu0 0.0
  %147 = vmatprep.subr.mxu0 0.0
  %148 = vmatpush1.msra.mxu0 0.0
  %149 = vmatprep.subr.mxu0 0.0
  %150 = vmatpush1.msra.mxu0 0.0
  %151 = vmatprep.subr.mxu0 0.0
  %152 = vmatpush1.msra.mxu0 0.0
  %153 = vmatprep.subr.mxu0 0.0
  %154 = vmatpush1.msra.mxu0 0.0
  %155 = vmatprep.subr.mxu0 0.0
  %156 = vmatpush1.msra.mxu0 0.0
  %157 = vmatprep.subr.mxu0 0.0
  %158 = vmatpush1.msra.mxu0 0.0
  %159 = vmatprep.subr.mxu0 0.0
  %160 = vmatpush1.msra.mxu0 0.0
  %161 = vmatprep.subr.mxu0 0.0
  %162 = vmatpush1.msra.mxu0 0.0
  %163 = vmatprep.subr.mxu0 0.0
  %164 = vmatpush1.msra.mxu0 0.0
  %165 = vmatprep.subr.mxu0 0.0
  %166 = vmatpush1.msra.mxu0 0.0
  %167 = vmatprep.subr.mxu0 0.0
  %168 = vmatpush1.msra.mxu0 0.0
  %169 = vmatprep.subr.mxu0 0.0
  %170 = vmatpush1.msra.mxu0 0.0
  %171 = vmatprep.subr.mxu0 0.0
  %172 = vmatpush1.msra.mxu0 0.0
  %173 = vmatprep.subr.mxu0 0.0
  %174 = vmatpush1.msra.mxu0 0.0
  %175 = vmatprep.subr.mxu0 0.0
  %176 = vmatpush1.msra.mxu0 0.0
  %177 = vmatprep.subr.mxu0 0.0
  %178 = vmatpush1.msra.mxu0 0.0
  %179 = vmatprep.subr.mxu0 0.0
  %180 = vmatpush1.msra.mxu0 0.0
  %181 = vmatprep.subr.mxu0 0.0
  %182 = vmatpush1.msra.mxu0 0.0
  %183 = vmatprep.subr.mxu0 0.0
  %184 = vmatpush1.msra.mxu0 0.0
  %185 = vmatprep.subr.mxu0 0.0
  %186 = vmatpush1.msra.mxu0 0.0
  %187 = vmatprep.subr.mxu0 0.0
  %188 = vmatpush1.msra.mxu0 0.0
  %189 = vmatprep.subr.mxu0 0.0
  %190 = vmatpush1.msra.mxu0 0.0
  %191 = vmatprep.subr.mxu0 0.0
  %192 = vmatpush1.msra.mxu0 0.0
  %193 = vmatprep.subr.mxu0 0.0
  %194 = vmatpush1.msra.mxu0 0.0
  %195 = vmatprep.subr.mxu0 0.0
  %196 = vmatpush1.msra.mxu0 0.0
  %197 = vmatprep.subr.mxu0 0.0
  %198 = vmatpush1.msra.mxu0 0.0
  %199 = vmatprep.subr.mxu0 0.0
  %200 = vmatpush1.msra.mxu0 0.0
  %201 = vmatprep.mubr.f32.mxu0 0.0
  %202 = vmatmul.mubr.f32.gmra.mrb[0].mxu0 %v47
  %v203 = vpop.f32.mrb[0].mxu0
  %v204 = vadd.f32 %v39, %v203
  %v205 = vpop.f32.mrb[0].mxu0
  %206 = vdwg.mxu0
  %v207 = vmax.f32 %v204, 0.0
  %s208 = scalar_lea.vmem %s7, 1
  %v209 = vld [vmem:[%s208] sm:$0x1]
  %v210 = vlaneseq
  %v211 = vshrl.u32 %v210, 7
  %v212 = vsub.s32 0, %v211
  %v213 = vrot.slane %v209, %v212
  %vm214 = vcmp.gt.f32.partialorder %v207, %v123
  %v215 = vsel %vm214, %v207, %v123
  %v216 = vsel %vm214, %v213, %v128
  %s217 = scalar_lea.vmem %s0, 64
  %v218 = vld [vmem:[%s217] sm:$0xff]
  %v219 = vld [vmem:[%s217 + $0x8] sm:$0xff]
  %v220 = vld [vmem:[%s217 + $0x10] sm:$0xff]
  %v221 = vld [vmem:[%s217 + $0x18] sm:$0x7]
  %v223 = vsel %vm49, %v221, 0
  %225 = vmatprep.subr.mxu0 0.0
  %226 = vmatpush1.msra.mxu0 %v218
  %227 = vmatprep.subr.mxu0 0.0
  %228 = vmatpush1.msra.mxu0 %v219
  %229 = vmatprep.subr.mxu0 0.0
  %230 = vmatpush1.msra.mxu0 %v220
  %231 = vmatprep.subr.mxu0 0.0
  %232 = vmatpush1.msra.mxu0 %v223
  %233 = vmatprep.subr.mxu0 0.0
  %234 = vmatpush1.msra.mxu0 0.0
  %235 = vmatprep.subr.mxu0 0.0
  %236 = vmatpush1.msra.mxu0 0.0
  %237 = vmatprep.subr.mxu0 0.0
  %238 = vmatpush1.msra.mxu0 0.0
  %239 = vmatprep.subr.mxu0 0.0
  %240 = vmatpush1.msra.mxu0 0.0
  %241 = vmatprep.subr.mxu0 0.0
  %242 = vmatpush1.msra.mxu0 0.0
  %243 = vmatprep.subr.mxu0 0.0
  %244 = vmatpush1.msra.mxu0 0.0
  %245 = vmatprep.subr.mxu0 0.0
  %246 = vmatpush1.msra.mxu0 0.0
  %247 = vmatprep.subr.mxu0 0.0
  %248 = vmatpush1.msra.mxu0 0.0
  %249 = vmatprep.subr.mxu0 0.0
  %250 = vmatpush1.msra.mxu0 0.0
  %251 = vmatprep.subr.mxu0 0.0
  %252 = vmatpush1.msra.mxu0 0.0
  %253 = vmatprep.subr.mxu0 0.0
  %254 = vmatpush1.msra.mxu0 0.0
  %255 = vmatprep.subr.mxu0 0.0
  %256 = vmatpush1.msra.mxu0 0.0
  %257 = vmatprep.subr.mxu0 0.0
  %258 = vmatpush1.msra.mxu0 0.0
  %259 = vmatprep.subr.mxu0 0.0
  %260 = vmatpush1.msra.mxu0 0.0
  %261 = vmatprep.subr.mxu0 0.0
  %262 = vmatpush1.msra.mxu0 0.0
  %263 = vmatprep.subr.mxu0 0.0
  %264 = vmatpush1.msra.mxu0 0.0
  %265 = vmatprep.subr.mxu0 0.0
  %266 = vmatpush1.msra.mxu0 0.0
  %267 = vmatprep.subr.mxu0 0.0
  %268 = vmatpush1.msra.mxu0 0.0
  %269 = vmatprep.subr.mxu0 0.0
  %270 = vmatpush1.msra.mxu0 0.0
  %271 = vmatprep.subr.mxu0 0.0
  %272 = vmatpush1.msra.mxu0 0.0
  %273 = vmatprep.subr.mxu0 0.0
  %274 = vmatpush1.msra.mxu0 0.0
  %275 = vmatprep.subr.mxu0 0.0
  %276 = vmatpush1.msra.mxu0 0.0
  %277 = vmatprep.subr.mxu0 0.0
  %278 = vmatpush1.msra.mxu0 0.0
  %279 = vmatprep.subr.mxu0 0.0
  %280 = vmatpush1.msra.mxu0 0.0
  %281 = vmatprep.subr.mxu0 0.0
  %282 = vmatpush1.msra.mxu0 0.0
  %283 = vmatprep.subr.mxu0 0.0
  %284 = vmatpush1.msra.mxu0 0.0
  %285 = vmatprep.subr.mxu0 0.0
  %286 = vmatpush1.msra.mxu0 0.0
  %287 = vmatprep.subr.mxu0 0.0
  %288 = vmatpush1.msra.mxu0 0.0
  %289 = vmatprep.mubr.f32.mxu0 0.0
  %290 = vmatmul.mubr.f32.gmra.mrb[0].mxu0 %v47
  %v291 = vpop.f32.mrb[0].mxu0
  %v292 = vadd.f32 %v39, %v291
  %v293 = vpop.f32.mrb[0].mxu0
  %294 = vdwg.mxu0
  %v295 = vmax.f32 %v292, 0.0
  %s296 = scalar_lea.vmem %s7, 2
  %v297 = vld [vmem:[%s296] sm:$0x1]
  %v298 = vlaneseq
  %v299 = vshrl.u32 %v298, 7
  %v300 = vsub.s32 0, %v299
  %v301 = vrot.slane %v297, %v300
  %vm302 = vcmp.gt.f32.partialorder %v295, %v215
  %v303 = vsel %vm302, %v295, %v215
  %v304 = vsel %vm302, %v301, %v216
  %s305 = scalar_lea.vmem %s0, 96
  %v306 = vld [vmem:[%s305] sm:$0xff]
  %v307 = vld [vmem:[%s305 + $0x8] sm:$0xff]
  %v308 = vld [vmem:[%s305 + $0x10] sm:$0xff]
  %v309 = vld [vmem:[%s305 + $0x18] sm:$0x7]
  %v311 = vsel %vm49, %v309, 0
  %313 = vmatprep.subr.mxu0 0.0
  %314 = vmatpush1.msra.mxu0 %v306
  %315 = vmatprep.subr.mxu0 0.0
  %316 = vmatpush1.msra.mxu0 %v307
  %317 = vmatprep.subr.mxu0 0.0
  %318 = vmatpush1.msra.mxu0 %v308
  %319 = vmatprep.subr.mxu0 0.0
  %320 = vmatpush1.msra.mxu0 %v311
  %321 = vmatprep.subr.mxu0 0.0
  %322 = vmatpush1.msra.mxu0 0.0
  %323 = vmatprep.subr.mxu0 0.0
  %324 = vmatpush1.msra.mxu0 0.0
  %325 = vmatprep.subr.mxu0 0.0
  %326 = vmatpush1.msra.mxu0 0.0
  %327 = vmatprep.subr.mxu0 0.0
  %328 = vmatpush1.msra.mxu0 0.0
  %329 = vmatprep.subr.mxu0 0.0
  %330 = vmatpush1.msra.mxu0 0.0
  %331 = vmatprep.subr.mxu0 0.0
  %332 = vmatpush1.msra.mxu0 0.0
  %333 = vmatprep.subr.mxu0 0.0
  %334 = vmatpush1.msra.mxu0 0.0
  %335 = vmatprep.subr.mxu0 0.0
  %336 = vmatpush1.msra.mxu0 0.0
  %337 = vmatprep.subr.mxu0 0.0
  %338 = vmatpush1.msra.mxu0 0.0
  %339 = vmatprep.subr.mxu0 0.0
  %340 = vmatpush1.msra.mxu0 0.0
  %341 = vmatprep.subr.mxu0 0.0
  %342 = vmatpush1.msra.mxu0 0.0
  %343 = vmatprep.subr.mxu0 0.0
  %344 = vmatpush1.msra.mxu0 0.0
  %345 = vmatprep.subr.mxu0 0.0
  %346 = vmatpush1.msra.mxu0 0.0
  %347 = vmatprep.subr.mxu0 0.0
  %348 = vmatpush1.msra.mxu0 0.0
  %349 = vmatprep.subr.mxu0 0.0
  %350 = vmatpush1.msra.mxu0 0.0
  %351 = vmatprep.subr.mxu0 0.0
  %352 = vmatpush1.msra.mxu0 0.0
  %353 = vmatprep.subr.mxu0 0.0
  %354 = vmatpush1.msra.mxu0 0.0
  %355 = vmatprep.subr.mxu0 0.0
  %356 = vmatpush1.msra.mxu0 0.0
  %357 = vmatprep.subr.mxu0 0.0
  %358 = vmatpush1.msra.mxu0 0.0
  %359 = vmatprep.subr.mxu0 0.0
  %360 = vmatpush1.msra.mxu0 0.0
  %361 = vmatprep.subr.mxu0 0.0
  %362 = vmatpush1.msra.mxu0 0.0
  %363 = vmatprep.subr.mxu0 0.0
  %364 = vmatpush1.msra.mxu0 0.0
  %365 = vmatprep.subr.mxu0 0.0
  %366 = vmatpush1.msra.mxu0 0.0
  %367 = vmatprep.subr.mxu0 0.0
  %368 = vmatpush1.msra.mxu0 0.0
  %369 = vmatprep.subr.mxu0 0.0
  %370 = vmatpush1.msra.mxu0 0.0
  %371 = vmatprep.subr.mxu0 0.0
  %372 = vmatpush1.msra.mxu0 0.0
  %373 = vmatprep.subr.mxu0 0.0
  %374 = vmatpush1.msra.mxu0 0.0
  %375 = vmatprep.subr.mxu0 0.0
  %376 = vmatpush1.msra.mxu0 0.0
  %377 = vmatprep.mubr.f32.mxu0 0.0
  %378 = vmatmul.mubr.f32.gmra.mrb[0].mxu0 %v47
  %v379 = vpop.f32.mrb[0].mxu0
  %v380 = vadd.f32 %v39, %v379
  %v381 = vpop.f32.mrb[0].mxu0
  %382 = vdwg.mxu0
  %v383 = vmax.f32 %v380, 0.0
  %s384 = scalar_lea.vmem %s7, 3
  %v385 = vld [vmem:[%s384] sm:$0x1]
  %v386 = vlaneseq
  %v387 = vshrl.u32 %v386, 7
  %v388 = vsub.s32 0, %v387
  %v389 = vrot.slane %v385, %v388
  %vm390 = vcmp.gt.f32.partialorder %v383, %v303
  %v391 = vsel %vm390, %v383, %v303
  %v392 = vsel %vm390, %v389, %v304
  %s393 = scalar_lea.vmem %s0, 128
  %v394 = vld [vmem:[%s393] sm:$0xff]
  %v395 = vld [vmem:[%s393 + $0x8] sm:$0xff]
  %v396 = vld [vmem:[%s393 + $0x10] sm:$0xff]
  %v397 = vld [vmem:[%s393 + $0x18] sm:$0x7]
  %v399 = vsel %vm49, %v397, 0
  %401 = vmatprep.subr.mxu0 0.0
  %402 = vmatpush1.msra.mxu0 %v394
  %403 = vmatprep.subr.mxu0 0.0
  %404 = vmatpush1.msra.mxu0 %v395
  %405 = vmatprep.subr.mxu0 0.0
  %406 = vmatpush1.msra.mxu0 %v396
  %407 = vmatprep.subr.mxu0 0.0
  %408 = vmatpush1.msra.mxu0 %v399
  %409 = vmatprep.subr.mxu0 0.0
  %410 = vmatpush1.msra.mxu0 0.0
  %411 = vmatprep.subr.mxu0 0.0
  %412 = vmatpush1.msra.mxu0 0.0
  %413 = vmatprep.subr.mxu0 0.0
  %414 = vmatpush1.msra.mxu0 0.0
  %415 = vmatprep.subr.mxu0 0.0
  %416 = vmatpush1.msra.mxu0 0.0
  %417 = vmatprep.subr.mxu0 0.0
  %418 = vmatpush1.msra.mxu0 0.0
  %419 = vmatprep.subr.mxu0 0.0
  %420 = vmatpush1.msra.mxu0 0.0
  %421 = vmatprep.subr.mxu0 0.0
  %422 = vmatpush1.msra.mxu0 0.0
  %423 = vmatprep.subr.mxu0 0.0
  %424 = vmatpush1.msra.mxu0 0.0
  %425 = vmatprep.subr.mxu0 0.0
  %426 = vmatpush1.msra.mxu0 0.0
  %427 = vmatprep.subr.mxu0 0.0
  %428 = vmatpush1.msra.mxu0 0.0
  %429 = vmatprep.subr.mxu0 0.0
  %430 = vmatpush1.msra.mxu0 0.0
  %431 = vmatprep.subr.mxu0 0.0
  %432 = vmatpush1.msra.mxu0 0.0
  %433 = vmatprep.subr.mxu0 0.0
  %434 = vmatpush1.msra.mxu0 0.0
  %435 = vmatprep.subr.mxu0 0.0
  %436 = vmatpush1.msra.mxu0 0.0
  %437 = vmatprep.subr.mxu0 0.0
  %438 = vmatpush1.msra.mxu0 0.0
  %439 = vmatprep.subr.mxu0 0.0
  %440 = vmatpush1.msra.mxu0 0.0
  %441 = vmatprep.subr.mxu0 0.0
  %442 = vmatpush1.msra.mxu0 0.0
  %443 = vmatprep.subr.mxu0 0.0
  %444 = vmatpush1.msra.mxu0 0.0
  %445 = vmatprep.subr.mxu0 0.0
  %446 = vmatpush1.msra.mxu0 0.0
  %447 = vmatprep.subr.mxu0 0.0
  %448 = vmatpush1.msra.mxu0 0.0
  %449 = vmatprep.subr.mxu0 0.0
  %450 = vmatpush1.msra.mxu0 0.0
  %451 = vmatprep.subr.mxu0 0.0
  %452 = vmatpush1.msra.mxu0 0.0
  %453 = vmatprep.subr.mxu0 0.0
  %454 = vmatpush1.msra.mxu0 0.0
  %455 = vmatprep.subr.mxu0 0.0
  %456 = vmatpush1.msra.mxu0 0.0
  %457 = vmatprep.subr.mxu0 0.0
  %458 = vmatpush1.msra.mxu0 0.0
  %459 = vmatprep.subr.mxu0 0.0
  %460 = vmatpush1.msra.mxu0 0.0
  %461 = vmatprep.subr.mxu0 0.0
  %462 = vmatpush1.msra.mxu0 0.0
  %463 = vmatprep.subr.mxu0 0.0
  %464 = vmatpush1.msra.mxu0 0.0
  %465 = vmatprep.mubr.f32.mxu0 0.0
  %466 = vmatmul.mubr.f32.gmra.mrb[0].mxu0 %v47
  %v467 = vpop.f32.mrb[0].mxu0
  %v468 = vadd.f32 %v39, %v467
  %v469 = vpop.f32.mrb[0].mxu0
  %470 = vdwg.mxu0
  %v471 = vmax.f32 %v468, 0.0
  %s472 = scalar_lea.vmem %s7, 4
  %v473 = vld [vmem:[%s472] sm:$0x1]
  %v474 = vlaneseq
  %v475 = vshrl.u32 %v474, 7
  %v476 = vsub.s32 0, %v475
  %v477 = vrot.slane %v473, %v476
  %vm478 = vcmp.gt.f32.partialorder %v471, %v391
  %v479 = vsel %vm478, %v471, %v391
  %v480 = vsel %vm478, %v477, %v392
  %s481 = scalar_lea.vmem %s0, 160
  %v482 = vld [vmem:[%s481] sm:$0xff]
  %v483 = vld [vmem:[%s481 + $0x8] sm:$0xff]
  %v484 = vld [vmem:[%s481 + $0x10] sm:$0xff]
  %v485 = vld [vmem:[%s481 + $0x18] sm:$0x7]
  %v487 = vsel %vm49, %v485, 0
  %489 = vmatprep.subr.mxu0 0.0
  %490 = vmatpush1.msra.mxu0 %v482
  %491 = vmatprep.subr.mxu0 0.0
  %492 = vmatpush1.msra.mxu0 %v483
  %493 = vmatprep.subr.mxu0 0.0
  %494 = vmatpush1.msra.mxu0 %v484
  %495 = vmatprep.subr.mxu0 0.0
  %496 = vmatpush1.msra.mxu0 %v487
  %497 = vmatprep.subr.mxu0 0.0
  %498 = vmatpush1.msra.mxu0 0.0
  %499 = vmatprep.subr.mxu0 0.0
  %500 = vmatpush1.msra.mxu0 0.0
  %501 = vmatprep.subr.mxu0 0.0
  %502 = vmatpush1.msra.mxu0 0.0
  %503 = vmatprep.subr.mxu0 0.0
  %504 = vmatpush1.msra.mxu0 0.0
  %505 = vmatprep.subr.mxu0 0.0
  %506 = vmatpush1.msra.mxu0 0.0
  %507 = vmatprep.subr.mxu0 0.0
  %508 = vmatpush1.msra.mxu0 0.0
  %509 = vmatprep.subr.mxu0 0.0
  %510 = vmatpush1.msra.mxu0 0.0
  %511 = vmatprep.subr.mxu0 0.0
  %512 = vmatpush1.msra.mxu0 0.0
  %513 = vmatprep.subr.mxu0 0.0
  %514 = vmatpush1.msra.mxu0 0.0
  %515 = vmatprep.subr.mxu0 0.0
  %516 = vmatpush1.msra.mxu0 0.0
  %517 = vmatprep.subr.mxu0 0.0
  %518 = vmatpush1.msra.mxu0 0.0
  %519 = vmatprep.subr.mxu0 0.0
  %520 = vmatpush1.msra.mxu0 0.0
  %521 = vmatprep.subr.mxu0 0.0
  %522 = vmatpush1.msra.mxu0 0.0
  %523 = vmatprep.subr.mxu0 0.0
  %524 = vmatpush1.msra.mxu0 0.0
  %525 = vmatprep.subr.mxu0 0.0
  %526 = vmatpush1.msra.mxu0 0.0
  %527 = vmatprep.subr.mxu0 0.0
  %528 = vmatpush1.msra.mxu0 0.0
  %529 = vmatprep.subr.mxu0 0.0
  %530 = vmatpush1.msra.mxu0 0.0
  %531 = vmatprep.subr.mxu0 0.0
  %532 = vmatpush1.msra.mxu0 0.0
  %533 = vmatprep.subr.mxu0 0.0
  %534 = vmatpush1.msra.mxu0 0.0
  %535 = vmatprep.subr.mxu0 0.0
  %536 = vmatpush1.msra.mxu0 0.0
  %537 = vmatprep.subr.mxu0 0.0
  %538 = vmatpush1.msra.mxu0 0.0
  %539 = vmatprep.subr.mxu0 0.0
  %540 = vmatpush1.msra.mxu0 0.0
  %541 = vmatprep.subr.mxu0 0.0
  %542 = vmatpush1.msra.mxu0 0.0
  %543 = vmatprep.subr.mxu0 0.0
  %544 = vmatpush1.msra.mxu0 0.0
  %545 = vmatprep.subr.mxu0 0.0
  %546 = vmatpush1.msra.mxu0 0.0
  %547 = vmatprep.subr.mxu0 0.0
  %548 = vmatpush1.msra.mxu0 0.0
  %549 = vmatprep.subr.mxu0 0.0
  %550 = vmatpush1.msra.mxu0 0.0
  %551 = vmatprep.subr.mxu0 0.0
  %552 = vmatpush1.msra.mxu0 0.0
  %553 = vmatprep.mubr.f32.mxu0 0.0
  %554 = vmatmul.mubr.f32.gmra.mrb[0].mxu0 %v47
  %v555 = vpop.f32.mrb[0].mxu0
  %v556 = vadd.f32 %v39, %v555
  %v557 = vpop.f32.mrb[0].mxu0
  %558 = vdwg.mxu0
  %v559 = vmax.f32 %v556, 0.0
  %s560 = scalar_lea.vmem %s7, 5
  %v561 = vld [vmem:[%s560] sm:$0x1]
  %v562 = vlaneseq
  %v563 = vshrl.u32 %v562, 7
  %v564 = vsub.s32 0, %v563
  %v565 = vrot.slane %v561, %v564
  %vm566 = vcmp.gt.f32.partialorder %v559, %v479
  %v567 = vsel %vm566, %v559, %v479
  %v568 = vsel %vm566, %v565, %v480
  %s569 = scalar_lea.vmem %s0, 192
  %v570 = vld [vmem:[%s569] sm:$0xff]
  %v571 = vld [vmem:[%s569 + $0x8] sm:$0xff]
  %v572 = vld [vmem:[%s569 + $0x10] sm:$0xff]
  %v573 = vld [vmem:[%s569 + $0x18] sm:$0x7]
  %v575 = vsel %vm49, %v573, 0
  %577 = vmatprep.subr.mxu0 0.0
  %578 = vmatpush1.msra.mxu0 %v570
  %579 = vmatprep.subr.mxu0 0.0
  %580 = vmatpush1.msra.mxu0 %v571
  %581 = vmatprep.subr.mxu0 0.0
  %582 = vmatpush1.msra.mxu0 %v572
  %583 = vmatprep.subr.mxu0 0.0
  %584 = vmatpush1.msra.mxu0 %v575
  %585 = vmatprep.subr.mxu0 0.0
  %586 = vmatpush1.msra.mxu0 0.0
  %587 = vmatprep.subr.mxu0 0.0
  %588 = vmatpush1.msra.mxu0 0.0
  %589 = vmatprep.subr.mxu0 0.0
  %590 = vmatpush1.msra.mxu0 0.0
  %591 = vmatprep.subr.mxu0 0.0
  %592 = vmatpush1.msra.mxu0 0.0
  %593 = vmatprep.subr.mxu0 0.0
  %594 = vmatpush1.msra.mxu0 0.0
  %595 = vmatprep.subr.mxu0 0.0
  %596 = vmatpush1.msra.mxu0 0.0
  %597 = vmatprep.subr.mxu0 0.0
  %598 = vmatpush1.msra.mxu0 0.0
  %599 = vmatprep.subr.mxu0 0.0
  %600 = vmatpush1.msra.mxu0 0.0
  %601 = vmatprep.subr.mxu0 0.0
  %602 = vmatpush1.msra.mxu0 0.0
  %603 = vmatprep.subr.mxu0 0.0
  %604 = vmatpush1.msra.mxu0 0.0
  %605 = vmatprep.subr.mxu0 0.0
  %606 = vmatpush1.msra.mxu0 0.0
  %607 = vmatprep.subr.mxu0 0.0
  %608 = vmatpush1.msra.mxu0 0.0
  %609 = vmatprep.subr.mxu0 0.0
  %610 = vmatpush1.msra.mxu0 0.0
  %611 = vmatprep.subr.mxu0 0.0
  %612 = vmatpush1.msra.mxu0 0.0
  %613 = vmatprep.subr.mxu0 0.0
  %614 = vmatpush1.msra.mxu0 0.0
  %615 = vmatprep.subr.mxu0 0.0
  %616 = vmatpush1.msra.mxu0 0.0
  %617 = vmatprep.subr.mxu0 0.0
  %618 = vmatpush1.msra.mxu0 0.0
  %619 = vmatprep.subr.mxu0 0.0
  %620 = vmatpush1.msra.mxu0 0.0
  %621 = vmatprep.subr.mxu0 0.0
  %622 = vmatpush1.msra.mxu0 0.0
  %623 = vmatprep.subr.mxu0 0.0
  %624 = vmatpush1.msra.mxu0 0.0
  %625 = vmatprep.subr.mxu0 0.0
  %626 = vmatpush1.msra.mxu0 0.0
  %627 = vmatprep.subr.mxu0 0.0
  %628 = vmatpush1.msra.mxu0 0.0
  %629 = vmatprep.subr.mxu0 0.0
  %630 = vmatpush1.msra.mxu0 0.0
  %631 = vmatprep.subr.mxu0 0.0
  %632 = vmatpush1.msra.mxu0 0.0
  %633 = vmatprep.subr.mxu0 0.0
  %634 = vmatpush1.msra.mxu0 0.0
  %635 = vmatprep.subr.mxu0 0.0
  %636 = vmatpush1.msra.mxu0 0.0
  %637 = vmatprep.subr.mxu0 0.0
  %638 = vmatpush1.msra.mxu0 0.0
  %639 = vmatprep.subr.mxu0 0.0
  %640 = vmatpush1.msra.mxu0 0.0
  %641 = vmatprep.mubr.f32.mxu0 0.0
  %642 = vmatmul.mubr.f32.gmra.mrb[0].mxu0 %v47
  %v643 = vpop.f32.mrb[0].mxu0
  %v644 = vadd.f32 %v39, %v643
  %v645 = vpop.f32.mrb[0].mxu0
  %646 = vdwg.mxu0
  %v647 = vmax.f32 %v644, 0.0
  %s648 = scalar_lea.vmem %s7, 6
  %v649 = vld [vmem:[%s648] sm:$0x1]
  %v650 = vlaneseq
  %v651 = vshrl.u32 %v650, 7
  %v652 = vsub.s32 0, %v651
  %v653 = vrot.slane %v649, %v652
  %vm654 = vcmp.gt.f32.partialorder %v647, %v567
  %v655 = vsel %vm654, %v647, %v567
  %v656 = vsel %vm654, %v653, %v568
  %s657 = scalar_lea.vmem %s0, 224
  %v658 = vld [vmem:[%s657] sm:$0xff]
  %v659 = vld [vmem:[%s657 + $0x8] sm:$0xff]
  %v660 = vld [vmem:[%s657 + $0x10] sm:$0xff]
  %v661 = vld [vmem:[%s657 + $0x18] sm:$0x7]
  %v663 = vsel %vm49, %v661, 0
  %665 = vmatprep.subr.mxu0 0.0
  %666 = vmatpush1.msra.mxu0 %v658
  %667 = vmatprep.subr.mxu0 0.0
  %668 = vmatpush1.msra.mxu0 %v659
  %669 = vmatprep.subr.mxu0 0.0
  %670 = vmatpush1.msra.mxu0 %v660
  %671 = vmatprep.subr.mxu0 0.0
  %672 = vmatpush1.msra.mxu0 %v663
  %673 = vmatprep.subr.mxu0 0.0
  %674 = vmatpush1.msra.mxu0 0.0
  %675 = vmatprep.subr.mxu0 0.0
  %676 = vmatpush1.msra.mxu0 0.0
  %677 = vmatprep.subr.mxu0 0.0
  %678 = vmatpush1.msra.mxu0 0.0
  %679 = vmatprep.subr.mxu0 0.0
  %680 = vmatpush1.msra.mxu0 0.0
  %681 = vmatprep.subr.mxu0 0.0
  %682 = vmatpush1.msra.mxu0 0.0
  %683 = vmatprep.subr.mxu0 0.0
  %684 = vmatpush1.msra.mxu0 0.0
  %685 = vmatprep.subr.mxu0 0.0
  %686 = vmatpush1.msra.mxu0 0.0
  %687 = vmatprep.subr.mxu0 0.0
  %688 = vmatpush1.msra.mxu0 0.0
  %689 = vmatprep.subr.mxu0 0.0
  %690 = vmatpush1.msra.mxu0 0.0
  %691 = vmatprep.subr.mxu0 0.0
  %692 = vmatpush1.msra.mxu0 0.0
  %693 = vmatprep.subr.mxu0 0.0
  %694 = vmatpush1.msra.mxu0 0.0
  %695 = vmatprep.subr.mxu0 0.0
  %696 = vmatpush1.msra.mxu0 0.0
  %697 = vmatprep.subr.mxu0 0.0
  %698 = vmatpush1.msra.mxu0 0.0
  %699 = vmatprep.subr.mxu0 0.0
  %700 = vmatpush1.msra.mxu0 0.0
  %701 = vmatprep.subr.mxu0 0.0
  %702 = vmatpush1.msra.mxu0 0.0
  %703 = vmatprep.subr.mxu0 0.0
  %704 = vmatpush1.msra.mxu0 0.0
  %705 = vmatprep.subr.mxu0 0.0
  %706 = vmatpush1.msra.mxu0 0.0
  %707 = vmatprep.subr.mxu0 0.0
  %708 = vmatpush1.msra.mxu0 0.0
  %709 = vmatprep.subr.mxu0 0.0
  %710 = vmatpush1.msra.mxu0 0.0
  %711 = vmatprep.subr.mxu0 0.0
  %712 = vmatpush1.msra.mxu0 0.0
  %713 = vmatprep.subr.mxu0 0.0
  %714 = vmatpush1.msra.mxu0 0.0
  %715 = vmatprep.subr.mxu0 0.0
  %716 = vmatpush1.msra.mxu0 0.0
  %717 = vmatprep.subr.mxu0 0.0
  %718 = vmatpush1.msra.mxu0 0.0
  %719 = vmatprep.subr.mxu0 0.0
  %720 = vmatpush1.msra.mxu0 0.0
  %721 = vmatprep.subr.mxu0 0.0
  %722 = vmatpush1.msra.mxu0 0.0
  %723 = vmatprep.subr.mxu0 0.0
  %724 = vmatpush1.msra.mxu0 0.0
  %725 = vmatprep.subr.mxu0 0.0
  %726 = vmatpush1.msra.mxu0 0.0
  %727 = vmatprep.subr.mxu0 0.0
  %728 = vmatpush1.msra.mxu0 0.0
  %729 = vmatprep.mubr.f32.mxu0 0.0
  %730 = vmatmul.mubr.f32.gmra.mrb[0].mxu0 %v47
  %v731 = vpop.f32.mrb[0].mxu0
  %v732 = vadd.f32 %v39, %v731
  %v733 = vpop.f32.mrb[0].mxu0
  %734 = vdwg.mxu0
  %v735 = vmax.f32 %v732, 0.0
  %s736 = scalar_lea.vmem %s7, 7
  %v737 = vld [vmem:[%s736] sm:$0x1]
  %v738 = vlaneseq
  %v739 = vshrl.u32 %v738, 7
  %v740 = vsub.s32 0, %v739
  %v741 = vrot.slane %v737, %v740
  %vm742 = vcmp.gt.f32.partialorder %v735, %v655
  %v743 = vsel %vm742, %v735, %v655
  %v744 = vsel %vm742, %v741, %v656
  %vm745 = vcmask 437248
  %746 = vst.msk [vmem:[%s10] sm:$0xf] %vm745, %v744
  %v747 = vld [vmem:[%s3] sm:$0xff]
  %v748 = vld [vmem:[%s3 + $0x8] sm:$0xff]
  %v749 = vld [vmem:[%s3 + $0x10] sm:$0xff]
  %v750 = vld [vmem:[%s3 + $0x18] sm:$0xff]
  %v751 = vlaneseq
  %v752 = vshrl.u32 %v751, 7
  %v753 = vsub.s32 0, %v752
  %v754 = vrot.slane %v743, %v753
  %v755 = vmul.f32 %v754, %v747
  %v756 = vmul.f32 %v754, %v748
  %v757 = vmul.f32 %v754, %v749
  %v758 = vmul.f32 %v754, %v750
  %s759 = scalar_lea.vmem %s3, 32
  %v760 = vld [vmem:[%s759] sm:$0xff]
  %v761 = vld [vmem:[%s759 + $0x8] sm:$0xff]
  %v762 = vld [vmem:[%s759 + $0x10] sm:$0xff]
  %v763 = vld [vmem:[%s759 + $0x18] sm:$0xff]
  %v764 = vlaneseq
  %v765 = vshrl.u32 %v764, 7
  %v766 = vsub.s32 1, %v765
  %v767 = vrot.slane %v743, %v766
  %v768 = vmul.f32 %v767, %v760
  %v769 = vmul.f32 %v767, %v761
  %v770 = vmul.f32 %v767, %v762
  %v771 = vmul.f32 %v767, %v763
  %v772 = vadd.f32 %v755, %v768
  %v773 = vadd.f32 %v756, %v769
  %v774 = vadd.f32 %v757, %v770
  %v775 = vadd.f32 %v758, %v771
  %s776 = scalar_lea.vmem %s3, 64
  %v777 = vld [vmem:[%s776] sm:$0xff]
  %v778 = vld [vmem:[%s776 + $0x8] sm:$0xff]
  %v779 = vld [vmem:[%s776 + $0x10] sm:$0xff]
  %v780 = vld [vmem:[%s776 + $0x18] sm:$0xff]
  %v781 = vlaneseq
  %v782 = vshrl.u32 %v781, 7
  %v783 = vsub.s32 2, %v782
  %v784 = vrot.slane %v743, %v783
  %v785 = vmul.f32 %v784, %v777
  %v786 = vmul.f32 %v784, %v778
  %v787 = vmul.f32 %v784, %v779
  %v788 = vmul.f32 %v784, %v780
  %v789 = vadd.f32 %v772, %v785
  %v790 = vadd.f32 %v773, %v786
  %v791 = vadd.f32 %v774, %v787
  %v792 = vadd.f32 %v775, %v788
  %s793 = scalar_lea.vmem %s3, 96
  %v794 = vld [vmem:[%s793] sm:$0xff]
  %v795 = vld [vmem:[%s793 + $0x8] sm:$0xff]
  %v796 = vld [vmem:[%s793 + $0x10] sm:$0xff]
  %v797 = vld [vmem:[%s793 + $0x18] sm:$0xff]
  %v798 = vlaneseq
  %v799 = vshrl.u32 %v798, 7
  %v800 = vsub.s32 3, %v799
  %v801 = vrot.slane %v743, %v800
  %v802 = vmul.f32 %v801, %v794
  %v803 = vmul.f32 %v801, %v795
  %v804 = vmul.f32 %v801, %v796
  %v805 = vmul.f32 %v801, %v797
  %v806 = vadd.f32 %v789, %v802
  %v807 = vadd.f32 %v790, %v803
  %v808 = vadd.f32 %v791, %v804
  %v809 = vadd.f32 %v792, %v805
  %v810 = vld [vmem:[%s8] sm:$0x3]
  %v811 = vld [vmem:[%s4] sm:$0x1]
  %v813 = vlaneseq
  %v814 = vshrl.u32 %v813, 7
  %v815 = vsub.s32 0, %v814
  %v816 = vrot.slane %v811, %v815
  %vm818 = vcmask 441344
  %v820 = vsel %vm818, %v810, 0
  %v823 = vsel %vm818, %v806, 0
  %v826 = vsel %vm818, %v807, 0
  %v829 = vsel %vm818, %v808, 0
  %v832 = vsel %vm818, %v809, 0
  %834 = vmatprep.subr.mxu0 0.0
  %835 = vmatpush1.xpose.msra.mxu0 %v823
  %836 = vmatprep.subr.mxu0 0.0
  %837 = vmatpush1.xpose.msra.mxu0 %v826
  %838 = vmatprep.subr.mxu0 0.0
  %839 = vmatpush1.xpose.msra.mxu0 %v829
  %840 = vmatprep.subr.mxu0 0.0
  %841 = vmatpush1.xpose.msra.mxu0 %v832
  %842 = vmatprep.subr.mxu0 0.0
  %843 = vmatpush1.xpose.msra.mxu0 0.0
  %844 = vmatprep.subr.mxu0 0.0
  %845 = vmatpush1.xpose.msra.mxu0 0.0
  %846 = vmatprep.subr.mxu0 0.0
  %847 = vmatpush1.xpose.msra.mxu0 0.0
  %848 = vmatprep.subr.mxu0 0.0
  %849 = vmatpush1.xpose.msra.mxu0 0.0
  %850 = vmatprep.subr.mxu0 0.0
  %851 = vmatpush1.xpose.msra.mxu0 0.0
  %852 = vmatprep.subr.mxu0 0.0
  %853 = vmatpush1.xpose.msra.mxu0 0.0
  %854 = vmatprep.subr.mxu0 0.0
  %855 = vmatpush1.xpose.msra.mxu0 0.0
  %856 = vmatprep.subr.mxu0 0.0
  %857 = vmatpush1.xpose.msra.mxu0 0.0
  %858 = vmatprep.subr.mxu0 0.0
  %859 = vmatpush1.xpose.msra.mxu0 0.0
  %860 = vmatprep.subr.mxu0 0.0
  %861 = vmatpush1.xpose.msra.mxu0 0.0
  %862 = vmatprep.subr.mxu0 0.0
  %863 = vmatpush1.xpose.msra.mxu0 0.0
  %864 = vmatprep.subr.mxu0 0.0
  %865 = vmatpush1.xpose.msra.mxu0 0.0
  %866 = vmatprep.subr.mxu0 0.0
  %867 = vmatpush1.xpose.msra.mxu0 0.0
  %868 = vmatprep.subr.mxu0 0.0
  %869 = vmatpush1.xpose.msra.mxu0 0.0
  %870 = vmatprep.subr.mxu0 0.0
  %871 = vmatpush1.xpose.msra.mxu0 0.0
  %872 = vmatprep.subr.mxu0 0.0
  %873 = vmatpush1.xpose.msra.mxu0 0.0
  %874 = vmatprep.subr.mxu0 0.0
  %875 = vmatpush1.xpose.msra.mxu0 0.0
  %876 = vmatprep.subr.mxu0 0.0
  %877 = vmatpush1.xpose.msra.mxu0 0.0
  %878 = vmatprep.subr.mxu0 0.0
  %879 = vmatpush1.xpose.msra.mxu0 0.0
  %880 = vmatprep.subr.mxu0 0.0
  %881 = vmatpush1.xpose.msra.mxu0 0.0
  %882 = vmatprep.subr.mxu0 0.0
  %883 = vmatpush1.xpose.msra.mxu0 0.0
  %884 = vmatprep.subr.mxu0 0.0
  %885 = vmatpush1.xpose.msra.mxu0 0.0
  %886 = vmatprep.subr.mxu0 0.0
  %887 = vmatpush1.xpose.msra.mxu0 0.0
  %888 = vmatprep.subr.mxu0 0.0
  %889 = vmatpush1.xpose.msra.mxu0 0.0
  %890 = vmatprep.subr.mxu0 0.0
  %891 = vmatpush1.xpose.msra.mxu0 0.0
  %892 = vmatprep.subr.mxu0 0.0
  %893 = vmatpush1.xpose.msra.mxu0 0.0
  %894 = vmatprep.subr.mxu0 0.0
  %895 = vmatpush1.xpose.msra.mxu0 0.0
  %896 = vmatprep.subr.mxu0 0.0
  %897 = vmatpush1.xpose.msra.mxu0 0.0
  %898 = vmatprep.mubr.f32.mxu0 0.0
  %899 = vmatmul.mubr.f32.gmra.mrb[0].mxu0 %v820
  %v900 = vpop.f32.mrb[0].mxu0
  %v901 = vadd.f32 %v816, %v900
  %v902 = vpop.f32.mrb[0].mxu0
  %903 = vdwg.mxu0
  %v904 = vtanh.pop %v901
  %v905 = vld [vmem:[%s5] sm:$0xff]
  %v906 = vld [vmem:[%s5 + $0x8] sm:$0xff]
  %v907 = vld [vmem:[%s5 + $0x10] sm:$0xff]
  %v908 = vld [vmem:[%s5 + $0x18] sm:$0xff]
  %v909 = vld [vmem:[%s6] sm:$0x1]
  %v911 = vlaneseq
  %v912 = vshrl.u32 %v911, 7
  %v913 = vsub.s32 0, %v912
  %v914 = vrot.slane %v909, %v913
  %vm916 = vcmask 261120
  %v918 = vsel %vm916, %v904, 0
  %920 = vmatprep.subr.mxu0 0.0
  %921 = vmatpush1.msra.mxu0 %v905
  %922 = vmatprep.subr.mxu0 0.0
  %923 = vmatpush1.msra.mxu0 %v906
  %924 = vmatprep.subr.mxu0 0.0
  %925 = vmatpush1.msra.mxu0 %v907
  %926 = vmatprep.subr.mxu0 0.0
  %927 = vmatpush1.msra.mxu0 %v908
  %928 = vmatprep.subr.mxu0 0.0
  %929 = vmatpush1.msra.mxu0 0.0
  %930 = vmatprep.subr.mxu0 0.0
  %931 = vmatpush1.msra.mxu0 0.0
  %932 = vmatprep.subr.mxu0 0.0
  %933 = vmatpush1.msra.mxu0 0.0
  %934 = vmatprep.subr.mxu0 0.0
  %935 = vmatpush1.msra.mxu0 0.0
  %936 = vmatprep.subr.mxu0 0.0
  %937 = vmatpush1.msra.mxu0 0.0
  %938 = vmatprep.subr.mxu0 0.0
  %939 = vmatpush1.msra.mxu0 0.0
  %940 = vmatprep.subr.mxu0 0.0
  %941 = vmatpush1.msra.mxu0 0.0
  %942 = vmatprep.subr.mxu0 0.0
  %943 = vmatpush1.msra.mxu0 0.0
  %944 = vmatprep.subr.mxu0 0.0
  %945 = vmatpush1.msra.mxu0 0.0
  %946 = vmatprep.subr.mxu0 0.0
  %947 = vmatpush1.msra.mxu0 0.0
  %948 = vmatprep.subr.mxu0 0.0
  %949 = vmatpush1.msra.mxu0 0.0
  %950 = vmatprep.subr.mxu0 0.0
  %951 = vmatpush1.msra.mxu0 0.0
  %952 = vmatprep.subr.mxu0 0.0
  %953 = vmatpush1.msra.mxu0 0.0
  %954 = vmatprep.subr.mxu0 0.0
  %955 = vmatpush1.msra.mxu0 0.0
  %956 = vmatprep.subr.mxu0 0.0
  %957 = vmatpush1.msra.mxu0 0.0
  %958 = vmatprep.subr.mxu0 0.0
  %959 = vmatpush1.msra.mxu0 0.0
  %960 = vmatprep.subr.mxu0 0.0
  %961 = vmatpush1.msra.mxu0 0.0
  %962 = vmatprep.subr.mxu0 0.0
  %963 = vmatpush1.msra.mxu0 0.0
  %964 = vmatprep.subr.mxu0 0.0
  %965 = vmatpush1.msra.mxu0 0.0
  %966 = vmatprep.subr.mxu0 0.0
  %967 = vmatpush1.msra.mxu0 0.0
  %968 = vmatprep.subr.mxu0 0.0
  %969 = vmatpush1.msra.mxu0 0.0
  %970 = vmatprep.subr.mxu0 0.0
  %971 = vmatpush1.msra.mxu0 0.0
  %972 = vmatprep.subr.mxu0 0.0
  %973 = vmatpush1.msra.mxu0 0.0
  %974 = vmatprep.subr.mxu0 0.0
  %975 = vmatpush1.msra.mxu0 0.0
  %976 = vmatprep.subr.mxu0 0.0
  %977 = vmatpush1.msra.mxu0 0.0
  %978 = vmatprep.subr.mxu0 0.0
  %979 = vmatpush1.msra.mxu0 0.0
  %980 = vmatprep.subr.mxu0 0.0
  %981 = vmatpush1.msra.mxu0 0.0
  %982 = vmatprep.subr.mxu0 0.0
  %983 = vmatpush1.msra.mxu0 0.0
  %984 = vmatprep.mubr.f32.mxu0 0.0
  %985 = vmatmul.mubr.f32.gmra.mrb[0].mxu0 %v918
  %v986 = vpop.f32.mrb[0].mxu0
  %v987 = vadd.f32 %v914, %v986
  %v988 = vpop.f32.mrb[0].mxu0
  %989 = vdwg.mxu0
  %vm990 = vcmask 254976
  %991 = vst.msk [vmem:[%s9] sm:$0x3] %vm990, %v987
  // Predicated region
  $region38: #{run.1} parent=0 // pred_check
    _
  $region39: #{run.1} parent=0 // pred_check_branch
    %993 = sbr.rel (0) target = $region41
  $region40: #{run.1} parent=0 // pred_region
    _
  $region41: #{run.1} parent=0 // pred_fallthru
    _
  // Predicated region
  $region42: #{run.1} parent=0 // pred_check
    _
  $region43: #{run.1} parent=0 // pred_check_branch
    %995 = sbr.rel (0) target = $region45
  $region44: #{run.1} parent=0 // pred_region
    _
  $region45: #{run.1} parent=0 // pred_fallthru
    _
  // Predicated region
  $region46: #{run.1} parent=0 // pred_check
    _
  $region47: #{run.1} parent=0 // pred_check_branch
    %997 = sbr.rel (0) target = $region49
  $region48: #{run.1} parent=0 // pred_region
    _
  $region49: #{run.1} parent=0 // pred_fallthru
    _
  // Predicated region
  $region50: #{run.1} parent=0 // pred_check
    _
  $region51: #{run.1} parent=0 // pred_check_branch
    %999 = sbr.rel (0) target = $region53
  $region52: #{run.1} parent=0 // pred_region
    _
  $region53: #{run.1} parent=0 // pred_fallthru
    _

</llo_original>
